<compile_context>
chip_gen: v7x
topology: tpu7x:2x2x1
jax: 0.10.0
libtpu: 0.0.40
codegen_flags: <defaults>
</compile_context>

<pallas_src>
import jax
import jax.numpy as jnp
from jax.experimental import pallas as pl
from jax.experimental.pallas import tpu as pltpu

HIDDEN = 64          # hidden size of the torch module
INPUT_SIZE = 1
BATCH_TILE = 8       # one sublane tile of batch per grid step
# NUM_LAYERS = 2 is hard-coded as two explicit LSTM cells inside the kernel.


def _round_up(n, m):
    return -(-n // m) * m


def lstm_kalman_tuner_forward(x, params):
    """x: (B, T, 1) batch-first, like the torch module. Returns (Q, R)."""
    wih0, whh0, b0, wih1, whh1, b1, wfc, bfc = params
    B, T, I = x.shape
    assert I == INPUT_SIZE
    H = HIDDEN
    G = 4 * H
    BT = BATCH_TILE
    f32 = jnp.float32
    bf16 = jnp.bfloat16

    Bp = _round_up(max(B, BT), BT)               # batch padded to full sublanes
    NB = Bp // BT
    TC = min(128, _round_up(T, 8))               # time-chunk length (<= 1 lane tile)
    T_pad = _round_up(T, TC)
    NC = T_pad // TC
    LAST_POS = (T - 1) % TC                      # position of the last real step
    UNROLL = 8                                   # TC is always a multiple of 8

    # ---- x: (B, T, 1) -> (Bp, T_pad): batch on sublanes, time on lanes ----
    x2 = x[:, :, 0].astype(f32)
    x2 = jnp.pad(x2, ((0, Bp - B), (0, T_pad - T)))

    # ---- weights (math layout (in, 4H), PyTorch gate order [i, f, g, o]) ----
    w0x = wih0.astype(f32).reshape(1, G)                     # (1, 4H)   f32 (VPU path)
    b0c = b0.astype(f32).reshape(1, G)                       # b_ih0 + b_hh0
    b1c = b1.astype(f32).reshape(1, G)                       # b_ih1 + b_hh1
    w0h = whh0.astype(bf16)                                  # (H, 4H)   bf16 (MXU)
    w1 = jnp.concatenate([wih1, whh1], axis=0).astype(bf16)  # (2H, 4H)  fused, bf16
    wfc_t = wfc.astype(f32).T                                # (2, H)
    bfcc = bfc.astype(f32).reshape(1, 2)                     # (1, 2)

    def kernel(x_ref, w0x_ref, b0_ref, w0h_ref, w1_ref, b1_ref,
               wfc_ref, bfc_ref, out_ref, state_ref):
        c = pl.program_id(1)

        @pl.when(c == 0)
        def _():
            state_ref[...] = jnp.zeros_like(state_ref)

        # Hoisted per-chunk loads / broadcasts (JAX does not CSE broadcast_in_dim).
        xc = x_ref[...]                                          # (BT, TC) f32
        lane = jax.lax.broadcasted_iota(jnp.int32, (BT, TC), 1)  # lane ids
        w0x_b = jnp.broadcast_to(w0x_ref[...], (BT, G))
        b0_b = jnp.broadcast_to(b0_ref[...], (BT, G))
        b1_b = jnp.broadcast_to(b1_ref[...], (BT, G))

        def sig(z):
            # sigmoid(z) = 0.5*tanh(0.5*z) + 0.5: one EUP op instead of exp+recip.
            return 0.5 * jnp.tanh(0.5 * z) + 0.5

        def gate_act(g, c_prev):
            i = sig(g[:, 0 * H:1 * H])
            f = sig(g[:, 1 * H:2 * H])
            gg = jnp.tanh(g[:, 2 * H:3 * H])
            o = sig(g[:, 3 * H:4 * H])
            c_new = f * c_prev + i * gg
            return o * jnp.tanh(c_new), c_new

        def step(t, carry):
            h0, c0, h1, c1, keep = carry
            # layer-0 input path (no MXU, no scratch): pick x[:, t] via a
            # one-hot lane select + lane reduce -> (BT, 1), then broadcast-FMA.
            xcol = jnp.sum(jnp.where(lane == t, xc, 0.0), axis=1, keepdims=True)
            g0 = xcol * w0x_b + b0_b
            g0 = g0 + jnp.dot(h0.astype(bf16), w0h_ref[...],
                              preferred_element_type=f32)
            h0, c0 = gate_act(g0, c0)
            # layer 1: single fused K=2H matmul over [h0_new, h1_prev].
            # TODO(synk): on v7x (MRB) two K=H dots accumulating in place would
            # avoid materializing the concat.
            hcat = jnp.concatenate([h0, h1], axis=-1).astype(bf16)
            g1 = jnp.dot(hcat, w1_ref[...], preferred_element_type=f32) + b1_b
            h1, c1 = gate_act(g1, c1)
            # snapshot h1 at the last *real* timestep (trailing x is zero-padded).
            keep = jnp.where(t == LAST_POS, h1, keep)
            return h0, c0, h1, c1, keep

        carry0 = (state_ref[0], state_ref[1], state_ref[2], state_ref[3],
                  jnp.zeros((BT, H), f32))
        h0, c0, h1, c1, keep = jax.lax.fori_loop(0, TC, step, carry0,
                                                 unroll=UNROLL)
        state_ref[0] = h0
        state_ref[1] = c0
        state_ref[2] = h1
        state_ref[3] = c1

        @pl.when(c == pl.num_programs(1) - 1)
        def _():
            # Linear(H, 2) as VPU multiply + lane reduce, then exp.
            lq = (jnp.sum(keep * wfc_ref[0:1, :], axis=1, keepdims=True)
                  + bfc_ref[0:1, 0:1])
            lr = (jnp.sum(keep * wfc_ref[1:2, :], axis=1, keepdims=True)
                  + bfc_ref[0:1, 1:2])
            out_ref[...] = jnp.concatenate([jnp.exp(lq), jnp.exp(lr)], axis=1)

    def full(shape):
        return pl.BlockSpec(shape, lambda b, c, _s=shape: (0,) * len(_s))

    flops = 2 * T * Bp * (H * G + 2 * H * G)
    transcendentals = T * Bp * 10 * H
    bytes_accessed = (4 * (x2.size + w0x.size + b0c.size + b1c.size
                           + wfc_t.size + bfcc.size + 2 * Bp)
                      + 2 * (w0h.size + w1.size))

    out = pl.pallas_call(
        kernel,
        out_shape=jax.ShapeDtypeStruct((Bp, 2), f32),
        grid=(NB, NC),
        in_specs=[pl.BlockSpec((BT, TC), lambda b, c: (b, c)),   # x chunk
                  full((1, G)), full((1, G)),                    # w0x, b0
                  full((H, G)), full((2 * H, G)), full((1, G)),  # w0h, w1, b1
                  full((2, H)), full((1, 2))],                   # wfc, bfc
        out_specs=pl.BlockSpec((BT, 2), lambda b, c: (b, 0)),
        scratch_shapes=[pltpu.VMEM((4, BT, H), f32)],            # h0,c0,h1,c1 state
        compiler_params=pltpu.CompilerParams(
            dimension_semantics=("parallel", "arbitrary")),
        cost_estimate=pl.CostEstimate(flops=flops,
                                      transcendentals=transcendentals,
                                      bytes_accessed=bytes_accessed),
    )(x2, w0x, b0c, w0h, w1, b1c, wfc_t, bfcc)

    return out[:B, 0], out[:B, 1]


def init_params(key, input_size=INPUT_SIZE, hidden_size=HIDDEN):
    """Deterministic init mimicking PyTorch's U(-1/sqrt(H), 1/sqrt(H))."""
    H = hidden_size
    bound = 1.0 / (H ** 0.5)
    keys = jax.random.split(key, 12)

    def u(k_, shape):
        return jax.random.uniform(k_, shape, jnp.float32, -bound, bound)

    # Layer 0 (input_size -> H); weights pre-transposed to (in_dim, 4H),
    # gate order [i, f, g, o] like PyTorch.
    wih0 = u(keys[0], (input_size, 4 * H))
    whh0 = u(keys[1], (H, 4 * H))
    b0 = u(keys[2], (1, 4 * H)) + u(keys[3], (1, 4 * H))     # b_ih + b_hh
    # Layer 1 (H -> H)
    wih1 = u(keys[4], (H, 4 * H))
    whh1 = u(keys[5], (H, 4 * H))
    b1 = u(keys[6], (1, 4 * H)) + u(keys[7], (1, 4 * H))
    # fc: Linear(H, 2), transposed to (H, 2)
    wfc = jax.random.uniform(keys[8], (H, 2), jnp.float32, -bound, bound)
    bfc = jax.random.uniform(keys[9], (1, 2), jnp.float32, -bound, bound)
    return (wih0, whh0, b0, wih1, whh1, b1, wfc, bfc)


def reference_forward(x, params, matmul_dtype=jnp.bfloat16):
    """Pure-JAX reference of the same math.

    matmul_dtype=bfloat16 mirrors the kernel's MXU-native matmul operand
    precision (accumulation stays f32, all elementwise math is f32); pass
    jnp.float32 for a full-precision reference.
    """
    wih0, whh0, b0, wih1, whh1, b1, wfc, bfc = params
    B, T, _ = x.shape
    H = HIDDEN
    md = matmul_dtype

    def mm(a, w):
        return jnp.dot(a.astype(md), w.astype(md),
                       preferred_element_type=jnp.float32)

    def act(gates, c):
        i = jax.nn.sigmoid(gates[:, 0 * H:1 * H])
        f = jax.nn.sigmoid(gates[:, 1 * H:2 * H])
        g = jnp.tanh(gates[:, 2 * H:3 * H])
        o = jax.nn.sigmoid(gates[:, 3 * H:4 * H])
        c_new = f * c + i * g
        return o * jnp.tanh(c_new), c_new

    h0 = jnp.zeros((B, H), jnp.float32)
    c0 = jnp.zeros((B, H), jnp.float32)
    h1 = jnp.zeros((B, H), jnp.float32)
    c1 = jnp.zeros((B, H), jnp.float32)
    for t in range(T):
        x_t = x[:, t, :].astype(jnp.float32)                 # (B, 1)
        g0 = x_t * wih0 + b0 + mm(h0, whh0)
        h0, c0 = act(g0, c0)
        g1 = mm(h0, wih1) + mm(h1, whh1) + b1
        h1, c1 = act(g1, c1)
    out = jnp.exp(h1 @ wfc + bfc)
    return out[:, 0], out[:, 1]


if __name__ == "__main__":
    key = jax.random.PRNGKey(0)
    k_param, k_x = jax.random.split(key)

    B, T = 2, 8                          # small batch-first sequence input
    x = jax.random.normal(k_x, (B, T, INPUT_SIZE), dtype=jnp.float32)
    params = init_params(k_param)

    Q, R = lstm_kalman_tuner_forward(x, params)
    Q = jax.block_until_ready(Q)
    R = jax.block_until_ready(R)

    # Exact structural check vs. a reference with the same bf16 MXU operands.
    Q_ref, R_ref = reference_forward(x, params)
    assert jnp.allclose(Q, Q_ref, atol=2e-3, rtol=2e-3), (Q, Q_ref)
    assert jnp.allclose(R, R_ref, atol=2e-3, rtol=2e-3), (R, R_ref)

    # Sanity check vs. the full-f32 reference (bf16 matmul error is tiny at T=8).
    Q32, R32 = reference_forward(x, params, matmul_dtype=jnp.float32)
    assert jnp.allclose(Q, Q32, atol=5e-2, rtol=5e-2), (Q, Q32)
    assert jnp.allclose(R, R32, atol=5e-2, rtol=5e-2), (R, R32)

    print("KERNEL_OK")
</pallas_src>

<mosaic_0001>
module attributes {stable_mosaic.version = 11 : i64} {
  func.func @kernel(%arg0: i32, %arg1: i32, %arg2: memref<8x8xf32, #tpu.memory_space<vmem>>, %arg3: memref<1x256xf32, #tpu.memory_space<vmem>>, %arg4: memref<1x256xf32, #tpu.memory_space<vmem>>, %arg5: memref<64x256xbf16, #tpu.memory_space<vmem>>, %arg6: memref<128x256xbf16, #tpu.memory_space<vmem>>, %arg7: memref<1x256xf32, #tpu.memory_space<vmem>>, %arg8: memref<2x64xf32, #tpu.memory_space<vmem>>, %arg9: memref<1x2xf32, #tpu.memory_space<vmem>>, %arg10: memref<8x2xf32, #tpu.memory_space<vmem>>, %arg11: memref<4x8x64xf32, #tpu.memory_space<vmem>>) attributes {dimension_semantics = [#tpu.dimension_semantics<parallel>, #tpu.dimension_semantics<arbitrary>], iteration_bounds = array<i64: 1, 1>, scalar_prefetch = 0 : i64, scratch_operands = 1 : i64, tpu.core_type = #tpu.core_type<tc>, window_params = [{transform_indices = @transform_0, window_bounds = array<i64: 8, 8>}, {pipeline_mode = #tpu.pipeline_mode<synchronous>, transform_indices = @transform_1, window_bounds = array<i64: 1, 256>}, {pipeline_mode = #tpu.pipeline_mode<synchronous>, transform_indices = @transform_2, window_bounds = array<i64: 1, 256>}, {pipeline_mode = #tpu.pipeline_mode<synchronous>, transform_indices = @transform_3, window_bounds = array<i64: 64, 256>}, {pipeline_mode = #tpu.pipeline_mode<synchronous>, transform_indices = @transform_4, window_bounds = array<i64: 128, 256>}, {pipeline_mode = #tpu.pipeline_mode<synchronous>, transform_indices = @transform_5, window_bounds = array<i64: 1, 256>}, {pipeline_mode = #tpu.pipeline_mode<synchronous>, transform_indices = @transform_6, window_bounds = array<i64: 2, 64>}, {pipeline_mode = #tpu.pipeline_mode<synchronous>, transform_indices = @transform_7, window_bounds = array<i64: 1, 2>}, {transform_indices = @transform_8, window_bounds = array<i64: 8, 2>}]} {
    %c0_i32 = arith.constant 0 : i32
    %0 = arith.cmpi eq, %arg1, %c0_i32 : i32
    %1 = arith.extui %0 : i1 to i32
    %c0_i32_0 = arith.constant 0 : i32
    %2 = arith.cmpi ne, %1, %c0_i32_0 : i32
    scf.if %2 {
      %cst_248 = arith.constant 0.000000e+00 : f32
      %694 = vector.broadcast %cst_248 : f32 to vector<4x8x64xf32>
      %c0_249 = arith.constant 0 : index
      %c0_250 = arith.constant 0 : index
      %c0_251 = arith.constant 0 : index
      %695 = vector.load %arg11[%c0_249, %c0_250, %c0_251] : memref<4x8x64xf32, #tpu.memory_space<vmem>>, vector<4x8x64xf32>
      tpu.vector_store %arg11[%c0_249, %c0_250, %c0_251], %694 {strides = array<i32>} : memref<4x8x64xf32, #tpu.memory_space<vmem>>, vector<4x8x64xf32>,
    } else {
    }
    %c0 = arith.constant 0 : index
    %c0_1 = arith.constant 0 : index
    %3 = vector.load %arg2[%c0, %c0_1] : memref<8x8xf32, #tpu.memory_space<vmem>>, vector<8x8xf32>
    %4 = tpu.iota {dimensions = array<i32: 1>} : vector<8x8xi32>
    %c0_2 = arith.constant 0 : index
    %c0_3 = arith.constant 0 : index
    %5 = vector.load %arg3[%c0_2, %c0_3] : memref<1x256xf32, #tpu.memory_space<vmem>>, vector<1x256xf32>
    %6 = vector.shape_cast %5 : vector<1x256xf32> to vector<1x256xf32>
    %7 = vector.broadcast %6 : vector<1x256xf32> to vector<8x256xf32>
    %c0_4 = arith.constant 0 : index
    %c0_5 = arith.constant 0 : index
    %8 = vector.load %arg4[%c0_4, %c0_5] : memref<1x256xf32, #tpu.memory_space<vmem>>, vector<1x256xf32>
    %9 = vector.shape_cast %8 : vector<1x256xf32> to vector<1x256xf32>
    %10 = vector.broadcast %9 : vector<1x256xf32> to vector<8x256xf32>
    %c0_6 = arith.constant 0 : index
    %c0_7 = arith.constant 0 : index
    %11 = vector.load %arg7[%c0_6, %c0_7] : memref<1x256xf32, #tpu.memory_space<vmem>>, vector<1x256xf32>
    %12 = vector.shape_cast %11 : vector<1x256xf32> to vector<1x256xf32>
    %13 = vector.broadcast %12 : vector<1x256xf32> to vector<8x256xf32>
    %c0_8 = arith.constant 0 : index
    %c0_9 = arith.constant 0 : index
    %c0_10 = arith.constant 0 : index
    %14 = vector.load %arg11[%c0_8, %c0_9, %c0_10] : memref<4x8x64xf32, #tpu.memory_space<vmem>>, vector<1x8x64xf32>
    %15 = vector.shape_cast %14 : vector<1x8x64xf32> to vector<8x64xf32>
    %c1 = arith.constant 1 : index
    %c0_11 = arith.constant 0 : index
    %c0_12 = arith.constant 0 : index
    %16 = vector.load %arg11[%c1, %c0_11, %c0_12] : memref<4x8x64xf32, #tpu.memory_space<vmem>>, vector<1x8x64xf32>
    %17 = vector.shape_cast %16 : vector<1x8x64xf32> to vector<8x64xf32>
    %c2 = arith.constant 2 : index
    %c0_13 = arith.constant 0 : index
    %c0_14 = arith.constant 0 : index
    %18 = vector.load %arg11[%c2, %c0_13, %c0_14] : memref<4x8x64xf32, #tpu.memory_space<vmem>>, vector<1x8x64xf32>
    %19 = vector.shape_cast %18 : vector<1x8x64xf32> to vector<8x64xf32>
    %c3 = arith.constant 3 : index
    %c0_15 = arith.constant 0 : index
    %c0_16 = arith.constant 0 : index
    %20 = vector.load %arg11[%c3, %c0_15, %c0_16] : memref<4x8x64xf32, #tpu.memory_space<vmem>>, vector<1x8x64xf32>
    %21 = vector.shape_cast %20 : vector<1x8x64xf32> to vector<8x64xf32>
    %cst = arith.constant 0.000000e+00 : f32
    %22 = vector.broadcast %cst : f32 to vector<8x64xf32>
    %c0_i32_17 = arith.constant 0 : i32
    %23 = vector.broadcast %c0_i32_17 : i32 to vector<8x8xi32>
    %24 = arith.cmpi eq, %4, %23 : vector<8x8xi32>
    %cst_18 = arith.constant 0.000000e+00 : f32
    %25 = vector.broadcast %cst_18 : f32 to vector<8x8xf32>
    %26 = arith.select %24, %3, %25 : vector<8x8xi1>, vector<8x8xf32>
    %cst_19 = arith.constant dense<0.000000e+00> : vector<8xf32>
    %27 = vector.multi_reduction <add>, %26, %cst_19 [1] : vector<8x8xf32> to vector<8xf32>
    %28 = vector.shape_cast %27 : vector<8xf32> to vector<8x1xf32>
    %29 = vector.broadcast %28 : vector<8x1xf32> to vector<8x256xf32>
    %30 = arith.mulf %29, %7 : vector<8x256xf32>
    %31 = arith.addf %30, %10 : vector<8x256xf32>
    %32 = arith.truncf %15 : vector<8x64xf32> to vector<8x64xbf16>
    %c0_20 = arith.constant 0 : index
    %c0_21 = arith.constant 0 : index
    %33 = vector.load %arg5[%c0_20, %c0_21] : memref<64x256xbf16, #tpu.memory_space<vmem>>, vector<64x256xbf16>
    %cst_22 = arith.constant dense<0.000000e+00> : vector<8x256xf32>
    %34 = tpu.matmul %32, %33, %cst_22 {dimension_numbers = #tpu.dot_dimension_numbers<[1], [0], [0], [1], [0, 0, 1, 1], [], []>} : vector<8x64xbf16>, vector<64x256xbf16>, vector<8x256xf32> -> vector<8x256xf32>
    %35 = arith.addf %31, %34 : vector<8x256xf32>
    %36 = vector.extract_strided_slice %35 {offsets = [0, 0], sizes = [8, 64], strides = [1, 1]} : vector<8x256xf32> to vector<8x64xf32>
    %cst_23 = arith.constant 5.000000e-01 : f32
    %37 = vector.broadcast %cst_23 : f32 to vector<8x64xf32>
    %38 = arith.mulf %37, %36 : vector<8x64xf32>
    %39 = math.tanh %38 : vector<8x64xf32>
    %cst_24 = arith.constant 5.000000e-01 : f32
    %40 = vector.broadcast %cst_24 : f32 to vector<8x64xf32>
    %41 = arith.mulf %40, %39 : vector<8x64xf32>
    %cst_25 = arith.constant 5.000000e-01 : f32
    %42 = vector.broadcast %cst_25 : f32 to vector<8x64xf32>
    %43 = arith.addf %41, %42 : vector<8x64xf32>
    %44 = vector.extract_strided_slice %35 {offsets = [0, 64], sizes = [8, 64], strides = [1, 1]} : vector<8x256xf32> to vector<8x64xf32>
    %cst_26 = arith.constant 5.000000e-01 : f32
    %45 = vector.broadcast %cst_26 : f32 to vector<8x64xf32>
    %46 = arith.mulf %45, %44 : vector<8x64xf32>
    %47 = math.tanh %46 : vector<8x64xf32>
    %cst_27 = arith.constant 5.000000e-01 : f32
    %48 = vector.broadcast %cst_27 : f32 to vector<8x64xf32>
    %49 = arith.mulf %48, %47 : vector<8x64xf32>
    %cst_28 = arith.constant 5.000000e-01 : f32
    %50 = vector.broadcast %cst_28 : f32 to vector<8x64xf32>
    %51 = arith.addf %49, %50 : vector<8x64xf32>
    %52 = vector.extract_strided_slice %35 {offsets = [0, 128], sizes = [8, 64], strides = [1, 1]} : vector<8x256xf32> to vector<8x64xf32>
    %53 = math.tanh %52 : vector<8x64xf32>
    %54 = vector.extract_strided_slice %35 {offsets = [0, 192], sizes = [8, 64], strides = [1, 1]} : vector<8x256xf32> to vector<8x64xf32>
    %cst_29 = arith.constant 5.000000e-01 : f32
    %55 = vector.broadcast %cst_29 : f32 to vector<8x64xf32>
    %56 = arith.mulf %55, %54 : vector<8x64xf32>
    %57 = math.tanh %56 : vector<8x64xf32>
    %cst_30 = arith.constant 5.000000e-01 : f32
    %58 = vector.broadcast %cst_30 : f32 to vector<8x64xf32>
    %59 = arith.mulf %58, %57 : vector<8x64xf32>
    %cst_31 = arith.constant 5.000000e-01 : f32
    %60 = vector.broadcast %cst_31 : f32 to vector<8x64xf32>
    %61 = arith.addf %59, %60 : vector<8x64xf32>
    %62 = arith.mulf %51, %17 : vector<8x64xf32>
    %63 = arith.mulf %43, %53 : vector<8x64xf32>
    %64 = arith.addf %62, %63 : vector<8x64xf32>
    %65 = math.tanh %64 : vector<8x64xf32>
    %66 = arith.mulf %61, %65 : vector<8x64xf32>
    %67 = tpu.concatenate %66, %19 in 1 : vector<8x64xf32>, vector<8x64xf32> -> vector<8x128xf32>
    %68 = arith.truncf %67 : vector<8x128xf32> to vector<8x128xbf16>
    %c0_32 = arith.constant 0 : index
    %c0_33 = arith.constant 0 : index
    %69 = vector.load %arg6[%c0_32, %c0_33] : memref<128x256xbf16, #tpu.memory_space<vmem>>, vector<128x256xbf16>
    %cst_34 = arith.constant dense<0.000000e+00> : vector<8x256xf32>
    %70 = tpu.matmul %68, %69, %cst_34 {dimension_numbers = #tpu.dot_dimension_numbers<[1], [0], [0], [1], [0, 0, 1, 1], [], []>} : vector<8x128xbf16>, vector<128x256xbf16>, vector<8x256xf32> -> vector<8x256xf32>
    %71 = arith.addf %70, %13 : vector<8x256xf32>
    %72 = vector.extract_strided_slice %71 {offsets = [0, 0], sizes = [8, 64], strides = [1, 1]} : vector<8x256xf32> to vector<8x64xf32>
    %cst_35 = arith.constant 5.000000e-01 : f32
    %73 = vector.broadcast %cst_35 : f32 to vector<8x64xf32>
    %74 = arith.mulf %73, %72 : vector<8x64xf32>
    %75 = math.tanh %74 : vector<8x64xf32>
    %cst_36 = arith.constant 5.000000e-01 : f32
    %76 = vector.broadcast %cst_36 : f32 to vector<8x64xf32>
    %77 = arith.mulf %76, %75 : vector<8x64xf32>
    %cst_37 = arith.constant 5.000000e-01 : f32
    %78 = vector.broadcast %cst_37 : f32 to vector<8x64xf32>
    %79 = arith.addf %77, %78 : vector<8x64xf32>
    %80 = vector.extract_strided_slice %71 {offsets = [0, 64], sizes = [8, 64], strides = [1, 1]} : vector<8x256xf32> to vector<8x64xf32>
    %cst_38 = arith.constant 5.000000e-01 : f32
    %81 = vector.broadcast %cst_38 : f32 to vector<8x64xf32>
    %82 = arith.mulf %81, %80 : vector<8x64xf32>
    %83 = math.tanh %82 : vector<8x64xf32>
    %cst_39 = arith.constant 5.000000e-01 : f32
    %84 = vector.broadcast %cst_39 : f32 to vector<8x64xf32>
    %85 = arith.mulf %84, %83 : vector<8x64xf32>
    %cst_40 = arith.constant 5.000000e-01 : f32
    %86 = vector.broadcast %cst_40 : f32 to vector<8x64xf32>
    %87 = arith.addf %85, %86 : vector<8x64xf32>
    %88 = vector.extract_strided_slice %71 {offsets = [0, 128], sizes = [8, 64], strides = [1, 1]} : vector<8x256xf32> to vector<8x64xf32>
    %89 = math.tanh %88 : vector<8x64xf32>
    %90 = vector.extract_strided_slice %71 {offsets = [0, 192], sizes = [8, 64], strides = [1, 1]} : vector<8x256xf32> to vector<8x64xf32>
    %cst_41 = arith.constant 5.000000e-01 : f32
    %91 = vector.broadcast %cst_41 : f32 to vector<8x64xf32>
    %92 = arith.mulf %91, %90 : vector<8x64xf32>
    %93 = math.tanh %92 : vector<8x64xf32>
    %cst_42 = arith.constant 5.000000e-01 : f32
    %94 = vector.broadcast %cst_42 : f32 to vector<8x64xf32>
    %95 = arith.mulf %94, %93 : vector<8x64xf32>
    %cst_43 = arith.constant 5.000000e-01 : f32
    %96 = vector.broadcast %cst_43 : f32 to vector<8x64xf32>
    %97 = arith.addf %95, %96 : vector<8x64xf32>
    %98 = arith.mulf %87, %21 : vector<8x64xf32>
    %99 = arith.mulf %79, %89 : vector<8x64xf32>
    %100 = arith.addf %98, %99 : vector<8x64xf32>
    %101 = math.tanh %100 : vector<8x64xf32>
    %102 = arith.mulf %97, %101 : vector<8x64xf32>
    %c7_i32 = arith.constant 7 : i32
    %103 = arith.cmpi eq, %c0_i32_17, %c7_i32 : i32
    %104 = arith.select %103, %102, %22 : vector<8x64xf32>
    %c1_i32 = arith.constant 1 : i32
    %105 = vector.broadcast %c1_i32 : i32 to vector<8x8xi32>
    %106 = arith.cmpi eq, %4, %105 : vector<8x8xi32>
    %cst_44 = arith.constant 0.000000e+00 : f32
    %107 = vector.broadcast %cst_44 : f32 to vector<8x8xf32>
    %108 = arith.select %106, %3, %107 : vector<8x8xi1>, vector<8x8xf32>
    %cst_45 = arith.constant dense<0.000000e+00> : vector<8xf32>
    %109 = vector.multi_reduction <add>, %108, %cst_45 [1] : vector<8x8xf32> to vector<8xf32>
    %110 = vector.shape_cast %109 : vector<8xf32> to vector<8x1xf32>
    %111 = vector.broadcast %110 : vector<8x1xf32> to vector<8x256xf32>
    %112 = arith.mulf %111, %7 : vector<8x256xf32>
    %113 = arith.addf %112, %10 : vector<8x256xf32>
    %114 = arith.truncf %66 : vector<8x64xf32> to vector<8x64xbf16>
    %c0_46 = arith.constant 0 : index
    %c0_47 = arith.constant 0 : index
    %115 = vector.load %arg5[%c0_46, %c0_47] : memref<64x256xbf16, #tpu.memory_space<vmem>>, vector<64x256xbf16>
    %cst_48 = arith.constant dense<0.000000e+00> : vector<8x256xf32>
    %116 = tpu.matmul %114, %115, %cst_48 {dimension_numbers = #tpu.dot_dimension_numbers<[1], [0], [0], [1], [0, 0, 1, 1], [], []>} : vector<8x64xbf16>, vector<64x256xbf16>, vector<8x256xf32> -> vector<8x256xf32>
    %117 = arith.addf %113, %116 : vector<8x256xf32>
    %118 = vector.extract_strided_slice %117 {offsets = [0, 0], sizes = [8, 64], strides = [1, 1]} : vector<8x256xf32> to vector<8x64xf32>
    %cst_49 = arith.constant 5.000000e-01 : f32
    %119 = vector.broadcast %cst_49 : f32 to vector<8x64xf32>
    %120 = arith.mulf %119, %118 : vector<8x64xf32>
    %121 = math.tanh %120 : vector<8x64xf32>
    %cst_50 = arith.constant 5.000000e-01 : f32
    %122 = vector.broadcast %cst_50 : f32 to vector<8x64xf32>
    %123 = arith.mulf %122, %121 : vector<8x64xf32>
    %cst_51 = arith.constant 5.000000e-01 : f32
    %124 = vector.broadcast %cst_51 : f32 to vector<8x64xf32>
    %125 = arith.addf %123, %124 : vector<8x64xf32>
    %126 = vector.extract_strided_slice %117 {offsets = [0, 64], sizes = [8, 64], strides = [1, 1]} : vector<8x256xf32> to vector<8x64xf32>
    %cst_52 = arith.constant 5.000000e-01 : f32
    %127 = vector.broadcast %cst_52 : f32 to vector<8x64xf32>
    %128 = arith.mulf %127, %126 : vector<8x64xf32>
    %129 = math.tanh %128 : vector<8x64xf32>
    %cst_53 = arith.constant 5.000000e-01 : f32
    %130 = vector.broadcast %cst_53 : f32 to vector<8x64xf32>
    %131 = arith.mulf %130, %129 : vector<8x64xf32>
    %cst_54 = arith.constant 5.000000e-01 : f32
    %132 = vector.broadcast %cst_54 : f32 to vector<8x64xf32>
    %133 = arith.addf %131, %132 : vector<8x64xf32>
    %134 = vector.extract_strided_slice %117 {offsets = [0, 128], sizes = [8, 64], strides = [1, 1]} : vector<8x256xf32> to vector<8x64xf32>
    %135 = math.tanh %134 : vector<8x64xf32>
    %136 = vector.extract_strided_slice %117 {offsets = [0, 192], sizes = [8, 64], strides = [1, 1]} : vector<8x256xf32> to vector<8x64xf32>
    %cst_55 = arith.constant 5.000000e-01 : f32
    %137 = vector.broadcast %cst_55 : f32 to vector<8x64xf32>
    %138 = arith.mulf %137, %136 : vector<8x64xf32>
    %139 = math.tanh %138 : vector<8x64xf32>
    %cst_56 = arith.constant 5.000000e-01 : f32
    %140 = vector.broadcast %cst_56 : f32 to vector<8x64xf32>
    %141 = arith.mulf %140, %139 : vector<8x64xf32>
    %cst_57 = arith.constant 5.000000e-01 : f32
    %142 = vector.broadcast %cst_57 : f32 to vector<8x64xf32>
    %143 = arith.addf %141, %142 : vector<8x64xf32>
    %144 = arith.mulf %133, %64 : vector<8x64xf32>
    %145 = arith.mulf %125, %135 : vector<8x64xf32>
    %146 = arith.addf %144, %145 : vector<8x64xf32>
    %147 = math.tanh %146 : vector<8x64xf32>
    %148 = arith.mulf %143, %147 : vector<8x64xf32>
    %149 = tpu.concatenate %148, %102 in 1 : vector<8x64xf32>, vector<8x64xf32> -> vector<8x128xf32>
    %150 = arith.truncf %149 : vector<8x128xf32> to vector<8x128xbf16>
    %c0_58 = arith.constant 0 : index
    %c0_59 = arith.constant 0 : index
    %151 = vector.load %arg6[%c0_58, %c0_59] : memref<128x256xbf16, #tpu.memory_space<vmem>>, vector<128x256xbf16>
    %cst_60 = arith.constant dense<0.000000e+00> : vector<8x256xf32>
    %152 = tpu.matmul %150, %151, %cst_60 {dimension_numbers = #tpu.dot_dimension_numbers<[1], [0], [0], [1], [0, 0, 1, 1], [], []>} : vector<8x128xbf16>, vector<128x256xbf16>, vector<8x256xf32> -> vector<8x256xf32>
    %153 = arith.addf %152, %13 : vector<8x256xf32>
    %154 = vector.extract_strided_slice %153 {offsets = [0, 0], sizes = [8, 64], strides = [1, 1]} : vector<8x256xf32> to vector<8x64xf32>
    %cst_61 = arith.constant 5.000000e-01 : f32
    %155 = vector.broadcast %cst_61 : f32 to vector<8x64xf32>
    %156 = arith.mulf %155, %154 : vector<8x64xf32>
    %157 = math.tanh %156 : vector<8x64xf32>
    %cst_62 = arith.constant 5.000000e-01 : f32
    %158 = vector.broadcast %cst_62 : f32 to vector<8x64xf32>
    %159 = arith.mulf %158, %157 : vector<8x64xf32>
    %cst_63 = arith.constant 5.000000e-01 : f32
    %160 = vector.broadcast %cst_63 : f32 to vector<8x64xf32>
    %161 = arith.addf %159, %160 : vector<8x64xf32>
    %162 = vector.extract_strided_slice %153 {offsets = [0, 64], sizes = [8, 64], strides = [1, 1]} : vector<8x256xf32> to vector<8x64xf32>
    %cst_64 = arith.constant 5.000000e-01 : f32
    %163 = vector.broadcast %cst_64 : f32 to vector<8x64xf32>
    %164 = arith.mulf %163, %162 : vector<8x64xf32>
    %165 = math.tanh %164 : vector<8x64xf32>
    %cst_65 = arith.constant 5.000000e-01 : f32
    %166 = vector.broadcast %cst_65 : f32 to vector<8x64xf32>
    %167 = arith.mulf %166, %165 : vector<8x64xf32>
    %cst_66 = arith.constant 5.000000e-01 : f32
    %168 = vector.broadcast %cst_66 : f32 to vector<8x64xf32>
    %169 = arith.addf %167, %168 : vector<8x64xf32>
    %170 = vector.extract_strided_slice %153 {offsets = [0, 128], sizes = [8, 64], strides = [1, 1]} : vector<8x256xf32> to vector<8x64xf32>
    %171 = math.tanh %170 : vector<8x64xf32>
    %172 = vector.extract_strided_slice %153 {offsets = [0, 192], sizes = [8, 64], strides = [1, 1]} : vector<8x256xf32> to vector<8x64xf32>
    %cst_67 = arith.constant 5.000000e-01 : f32
    %173 = vector.broadcast %cst_67 : f32 to vector<8x64xf32>
    %174 = arith.mulf %173, %172 : vector<8x64xf32>
    %175 = math.tanh %174 : vector<8x64xf32>
    %cst_68 = arith.constant 5.000000e-01 : f32
    %176 = vector.broadcast %cst_68 : f32 to vector<8x64xf32>
    %177 = arith.mulf %176, %175 : vector<8x64xf32>
    %cst_69 = arith.constant 5.000000e-01 : f32
    %178 = vector.broadcast %cst_69 : f32 to vector<8x64xf32>
    %179 = arith.addf %177, %178 : vector<8x64xf32>
    %180 = arith.mulf %169, %100 : vector<8x64xf32>
    %181 = arith.mulf %161, %171 : vector<8x64xf32>
    %182 = arith.addf %180, %181 : vector<8x64xf32>
    %183 = math.tanh %182 : vector<8x64xf32>
    %184 = arith.mulf %179, %183 : vector<8x64xf32>
    %c7_i32_70 = arith.constant 7 : i32
    %185 = arith.cmpi eq, %c1_i32, %c7_i32_70 : i32
    %186 = arith.select %185, %184, %104 : vector<8x64xf32>
    %c2_i32 = arith.constant 2 : i32
    %187 = vector.broadcast %c2_i32 : i32 to vector<8x8xi32>
    %188 = arith.cmpi eq, %4, %187 : vector<8x8xi32>
    %cst_71 = arith.constant 0.000000e+00 : f32
    %189 = vector.broadcast %cst_71 : f32 to vector<8x8xf32>
    %190 = arith.select %188, %3, %189 : vector<8x8xi1>, vector<8x8xf32>
    %cst_72 = arith.constant dense<0.000000e+00> : vector<8xf32>
    %191 = vector.multi_reduction <add>, %190, %cst_72 [1] : vector<8x8xf32> to vector<8xf32>
    %192 = vector.shape_cast %191 : vector<8xf32> to vector<8x1xf32>
    %193 = vector.broadcast %192 : vector<8x1xf32> to vector<8x256xf32>
    %194 = arith.mulf %193, %7 : vector<8x256xf32>
    %195 = arith.addf %194, %10 : vector<8x256xf32>
    %196 = arith.truncf %148 : vector<8x64xf32> to vector<8x64xbf16>
    %c0_73 = arith.constant 0 : index
    %c0_74 = arith.constant 0 : index
    %197 = vector.load %arg5[%c0_73, %c0_74] : memref<64x256xbf16, #tpu.memory_space<vmem>>, vector<64x256xbf16>
    %cst_75 = arith.constant dense<0.000000e+00> : vector<8x256xf32>
    %198 = tpu.matmul %196, %197, %cst_75 {dimension_numbers = #tpu.dot_dimension_numbers<[1], [0], [0], [1], [0, 0, 1, 1], [], []>} : vector<8x64xbf16>, vector<64x256xbf16>, vector<8x256xf32> -> vector<8x256xf32>
    %199 = arith.addf %195, %198 : vector<8x256xf32>
    %200 = vector.extract_strided_slice %199 {offsets = [0, 0], sizes = [8, 64], strides = [1, 1]} : vector<8x256xf32> to vector<8x64xf32>
    %cst_76 = arith.constant 5.000000e-01 : f32
    %201 = vector.broadcast %cst_76 : f32 to vector<8x64xf32>
    %202 = arith.mulf %201, %200 : vector<8x64xf32>
    %203 = math.tanh %202 : vector<8x64xf32>
    %cst_77 = arith.constant 5.000000e-01 : f32
    %204 = vector.broadcast %cst_77 : f32 to vector<8x64xf32>
    %205 = arith.mulf %204, %203 : vector<8x64xf32>
    %cst_78 = arith.constant 5.000000e-01 : f32
    %206 = vector.broadcast %cst_78 : f32 to vector<8x64xf32>
    %207 = arith.addf %205, %206 : vector<8x64xf32>
    %208 = vector.extract_strided_slice %199 {offsets = [0, 64], sizes = [8, 64], strides = [1, 1]} : vector<8x256xf32> to vector<8x64xf32>
    %cst_79 = arith.constant 5.000000e-01 : f32
    %209 = vector.broadcast %cst_79 : f32 to vector<8x64xf32>
    %210 = arith.mulf %209, %208 : vector<8x64xf32>
    %211 = math.tanh %210 : vector<8x64xf32>
    %cst_80 = arith.constant 5.000000e-01 : f32
    %212 = vector.broadcast %cst_80 : f32 to vector<8x64xf32>
    %213 = arith.mulf %212, %211 : vector<8x64xf32>
    %cst_81 = arith.constant 5.000000e-01 : f32
    %214 = vector.broadcast %cst_81 : f32 to vector<8x64xf32>
    %215 = arith.addf %213, %214 : vector<8x64xf32>
    %216 = vector.extract_strided_slice %199 {offsets = [0, 128], sizes = [8, 64], strides = [1, 1]} : vector<8x256xf32> to vector<8x64xf32>
    %217 = math.tanh %216 : vector<8x64xf32>
    %218 = vector.extract_strided_slice %199 {offsets = [0, 192], sizes = [8, 64], strides = [1, 1]} : vector<8x256xf32> to vector<8x64xf32>
    %cst_82 = arith.constant 5.000000e-01 : f32
    %219 = vector.broadcast %cst_82 : f32 to vector<8x64xf32>
    %220 = arith.mulf %219, %218 : vector<8x64xf32>
    %221 = math.tanh %220 : vector<8x64xf32>
    %cst_83 = arith.constant 5.000000e-01 : f32
    %222 = vector.broadcast %cst_83 : f32 to vector<8x64xf32>
    %223 = arith.mulf %222, %221 : vector<8x64xf32>
    %cst_84 = arith.constant 5.000000e-01 : f32
    %224 = vector.broadcast %cst_84 : f32 to vector<8x64xf32>
    %225 = arith.addf %223, %224 : vector<8x64xf32>
    %226 = arith.mulf %215, %146 : vector<8x64xf32>
    %227 = arith.mulf %207, %217 : vector<8x64xf32>
    %228 = arith.addf %226, %227 : vector<8x64xf32>
    %229 = math.tanh %228 : vector<8x64xf32>
    %230 = arith.mulf %225, %229 : vector<8x64xf32>
    %231 = tpu.concatenate %230, %184 in 1 : vector<8x64xf32>, vector<8x64xf32> -> vector<8x128xf32>
    %232 = arith.truncf %231 : vector<8x128xf32> to vector<8x128xbf16>
    %c0_85 = arith.constant 0 : index
    %c0_86 = arith.constant 0 : index
    %233 = vector.load %arg6[%c0_85, %c0_86] : memref<128x256xbf16, #tpu.memory_space<vmem>>, vector<128x256xbf16>
    %cst_87 = arith.constant dense<0.000000e+00> : vector<8x256xf32>
    %234 = tpu.matmul %232, %233, %cst_87 {dimension_numbers = #tpu.dot_dimension_numbers<[1], [0], [0], [1], [0, 0, 1, 1], [], []>} : vector<8x128xbf16>, vector<128x256xbf16>, vector<8x256xf32> -> vector<8x256xf32>
    %235 = arith.addf %234, %13 : vector<8x256xf32>
    %236 = vector.extract_strided_slice %235 {offsets = [0, 0], sizes = [8, 64], strides = [1, 1]} : vector<8x256xf32> to vector<8x64xf32>
    %cst_88 = arith.constant 5.000000e-01 : f32
    %237 = vector.broadcast %cst_88 : f32 to vector<8x64xf32>
    %238 = arith.mulf %237, %236 : vector<8x64xf32>
    %239 = math.tanh %238 : vector<8x64xf32>
    %cst_89 = arith.constant 5.000000e-01 : f32
    %240 = vector.broadcast %cst_89 : f32 to vector<8x64xf32>
    %241 = arith.mulf %240, %239 : vector<8x64xf32>
    %cst_90 = arith.constant 5.000000e-01 : f32
    %242 = vector.broadcast %cst_90 : f32 to vector<8x64xf32>
    %243 = arith.addf %241, %242 : vector<8x64xf32>
    %244 = vector.extract_strided_slice %235 {offsets = [0, 64], sizes = [8, 64], strides = [1, 1]} : vector<8x256xf32> to vector<8x64xf32>
    %cst_91 = arith.constant 5.000000e-01 : f32
    %245 = vector.broadcast %cst_91 : f32 to vector<8x64xf32>
    %246 = arith.mulf %245, %244 : vector<8x64xf32>
    %247 = math.tanh %246 : vector<8x64xf32>
    %cst_92 = arith.constant 5.000000e-01 : f32
    %248 = vector.broadcast %cst_92 : f32 to vector<8x64xf32>
    %249 = arith.mulf %248, %247 : vector<8x64xf32>
    %cst_93 = arith.constant 5.000000e-01 : f32
    %250 = vector.broadcast %cst_93 : f32 to vector<8x64xf32>
    %251 = arith.addf %249, %250 : vector<8x64xf32>
    %252 = vector.extract_strided_slice %235 {offsets = [0, 128], sizes = [8, 64], strides = [1, 1]} : vector<8x256xf32> to vector<8x64xf32>
    %253 = math.tanh %252 : vector<8x64xf32>
    %254 = vector.extract_strided_slice %235 {offsets = [0, 192], sizes = [8, 64], strides = [1, 1]} : vector<8x256xf32> to vector<8x64xf32>
    %cst_94 = arith.constant 5.000000e-01 : f32
    %255 = vector.broadcast %cst_94 : f32 to vector<8x64xf32>
    %256 = arith.mulf %255, %254 : vector<8x64xf32>
    %257 = math.tanh %256 : vector<8x64xf32>
    %cst_95 = arith.constant 5.000000e-01 : f32
    %258 = vector.broadcast %cst_95 : f32 to vector<8x64xf32>
    %259 = arith.mulf %258, %257 : vector<8x64xf32>
    %cst_96 = arith.constant 5.000000e-01 : f32
    %260 = vector.broadcast %cst_96 : f32 to vector<8x64xf32>
    %261 = arith.addf %259, %260 : vector<8x64xf32>
    %262 = arith.mulf %251, %182 : vector<8x64xf32>
    %263 = arith.mulf %243, %253 : vector<8x64xf32>
    %264 = arith.addf %262, %263 : vector<8x64xf32>
    %265 = math.tanh %264 : vector<8x64xf32>
    %266 = arith.mulf %261, %265 : vector<8x64xf32>
    %c7_i32_97 = arith.constant 7 : i32
    %267 = arith.cmpi eq, %c2_i32, %c7_i32_97 : i32
    %268 = arith.select %267, %266, %186 : vector<8x64xf32>
    %c3_i32 = arith.constant 3 : i32
    %269 = vector.broadcast %c3_i32 : i32 to vector<8x8xi32>
    %270 = arith.cmpi eq, %4, %269 : vector<8x8xi32>
    %cst_98 = arith.constant 0.000000e+00 : f32
    %271 = vector.broadcast %cst_98 : f32 to vector<8x8xf32>
    %272 = arith.select %270, %3, %271 : vector<8x8xi1>, vector<8x8xf32>
    %cst_99 = arith.constant dense<0.000000e+00> : vector<8xf32>
    %273 = vector.multi_reduction <add>, %272, %cst_99 [1] : vector<8x8xf32> to vector<8xf32>
    %274 = vector.shape_cast %273 : vector<8xf32> to vector<8x1xf32>
    %275 = vector.broadcast %274 : vector<8x1xf32> to vector<8x256xf32>
    %276 = arith.mulf %275, %7 : vector<8x256xf32>
    %277 = arith.addf %276, %10 : vector<8x256xf32>
    %278 = arith.truncf %230 : vector<8x64xf32> to vector<8x64xbf16>
    %c0_100 = arith.constant 0 : index
    %c0_101 = arith.constant 0 : index
    %279 = vector.load %arg5[%c0_100, %c0_101] : memref<64x256xbf16, #tpu.memory_space<vmem>>, vector<64x256xbf16>
    %cst_102 = arith.constant dense<0.000000e+00> : vector<8x256xf32>
    %280 = tpu.matmul %278, %279, %cst_102 {dimension_numbers = #tpu.dot_dimension_numbers<[1], [0], [0], [1], [0, 0, 1, 1], [], []>} : vector<8x64xbf16>, vector<64x256xbf16>, vector<8x256xf32> -> vector<8x256xf32>
    %281 = arith.addf %277, %280 : vector<8x256xf32>
    %282 = vector.extract_strided_slice %281 {offsets = [0, 0], sizes = [8, 64], strides = [1, 1]} : vector<8x256xf32> to vector<8x64xf32>
    %cst_103 = arith.constant 5.000000e-01 : f32
    %283 = vector.broadcast %cst_103 : f32 to vector<8x64xf32>
    %284 = arith.mulf %283, %282 : vector<8x64xf32>
    %285 = math.tanh %284 : vector<8x64xf32>
    %cst_104 = arith.constant 5.000000e-01 : f32
    %286 = vector.broadcast %cst_104 : f32 to vector<8x64xf32>
    %287 = arith.mulf %286, %285 : vector<8x64xf32>
    %cst_105 = arith.constant 5.000000e-01 : f32
    %288 = vector.broadcast %cst_105 : f32 to vector<8x64xf32>
    %289 = arith.addf %287, %288 : vector<8x64xf32>
    %290 = vector.extract_strided_slice %281 {offsets = [0, 64], sizes = [8, 64], strides = [1, 1]} : vector<8x256xf32> to vector<8x64xf32>
    %cst_106 = arith.constant 5.000000e-01 : f32
    %291 = vector.broadcast %cst_106 : f32 to vector<8x64xf32>
    %292 = arith.mulf %291, %290 : vector<8x64xf32>
    %293 = math.tanh %292 : vector<8x64xf32>
    %cst_107 = arith.constant 5.000000e-01 : f32
    %294 = vector.broadcast %cst_107 : f32 to vector<8x64xf32>
    %295 = arith.mulf %294, %293 : vector<8x64xf32>
    %cst_108 = arith.constant 5.000000e-01 : f32
    %296 = vector.broadcast %cst_108 : f32 to vector<8x64xf32>
    %297 = arith.addf %295, %296 : vector<8x64xf32>
    %298 = vector.extract_strided_slice %281 {offsets = [0, 128], sizes = [8, 64], strides = [1, 1]} : vector<8x256xf32> to vector<8x64xf32>
    %299 = math.tanh %298 : vector<8x64xf32>
    %300 = vector.extract_strided_slice %281 {offsets = [0, 192], sizes = [8, 64], strides = [1, 1]} : vector<8x256xf32> to vector<8x64xf32>
    %cst_109 = arith.constant 5.000000e-01 : f32
    %301 = vector.broadcast %cst_109 : f32 to vector<8x64xf32>
    %302 = arith.mulf %301, %300 : vector<8x64xf32>
    %303 = math.tanh %302 : vector<8x64xf32>
    %cst_110 = arith.constant 5.000000e-01 : f32
    %304 = vector.broadcast %cst_110 : f32 to vector<8x64xf32>
    %305 = arith.mulf %304, %303 : vector<8x64xf32>
    %cst_111 = arith.constant 5.000000e-01 : f32
    %306 = vector.broadcast %cst_111 : f32 to vector<8x64xf32>
    %307 = arith.addf %305, %306 : vector<8x64xf32>
    %308 = arith.mulf %297, %228 : vector<8x64xf32>
    %309 = arith.mulf %289, %299 : vector<8x64xf32>
    %310 = arith.addf %308, %309 : vector<8x64xf32>
    %311 = math.tanh %310 : vector<8x64xf32>
    %312 = arith.mulf %307, %311 : vector<8x64xf32>
    %313 = tpu.concatenate %312, %266 in 1 : vector<8x64xf32>, vector<8x64xf32> -> vector<8x128xf32>
    %314 = arith.truncf %313 : vector<8x128xf32> to vector<8x128xbf16>
    %c0_112 = arith.constant 0 : index
    %c0_113 = arith.constant 0 : index
    %315 = vector.load %arg6[%c0_112, %c0_113] : memref<128x256xbf16, #tpu.memory_space<vmem>>, vector<128x256xbf16>
    %cst_114 = arith.constant dense<0.000000e+00> : vector<8x256xf32>
    %316 = tpu.matmul %314, %315, %cst_114 {dimension_numbers = #tpu.dot_dimension_numbers<[1], [0], [0], [1], [0, 0, 1, 1], [], []>} : vector<8x128xbf16>, vector<128x256xbf16>, vector<8x256xf32> -> vector<8x256xf32>
    %317 = arith.addf %316, %13 : vector<8x256xf32>
    %318 = vector.extract_strided_slice %317 {offsets = [0, 0], sizes = [8, 64], strides = [1, 1]} : vector<8x256xf32> to vector<8x64xf32>
    %cst_115 = arith.constant 5.000000e-01 : f32
    %319 = vector.broadcast %cst_115 : f32 to vector<8x64xf32>
    %320 = arith.mulf %319, %318 : vector<8x64xf32>
    %321 = math.tanh %320 : vector<8x64xf32>
    %cst_116 = arith.constant 5.000000e-01 : f32
    %322 = vector.broadcast %cst_116 : f32 to vector<8x64xf32>
    %323 = arith.mulf %322, %321 : vector<8x64xf32>
    %cst_117 = arith.constant 5.000000e-01 : f32
    %324 = vector.broadcast %cst_117 : f32 to vector<8x64xf32>
    %325 = arith.addf %323, %324 : vector<8x64xf32>
    %326 = vector.extract_strided_slice %317 {offsets = [0, 64], sizes = [8, 64], strides = [1, 1]} : vector<8x256xf32> to vector<8x64xf32>
    %cst_118 = arith.constant 5.000000e-01 : f32
    %327 = vector.broadcast %cst_118 : f32 to vector<8x64xf32>
    %328 = arith.mulf %327, %326 : vector<8x64xf32>
    %329 = math.tanh %328 : vector<8x64xf32>
    %cst_119 = arith.constant 5.000000e-01 : f32
    %330 = vector.broadcast %cst_119 : f32 to vector<8x64xf32>
    %331 = arith.mulf %330, %329 : vector<8x64xf32>
    %cst_120 = arith.constant 5.000000e-01 : f32
    %332 = vector.broadcast %cst_120 : f32 to vector<8x64xf32>
    %333 = arith.addf %331, %332 : vector<8x64xf32>
    %334 = vector.extract_strided_slice %317 {offsets = [0, 128], sizes = [8, 64], strides = [1, 1]} : vector<8x256xf32> to vector<8x64xf32>
    %335 = math.tanh %334 : vector<8x64xf32>
    %336 = vector.extract_strided_slice %317 {offsets = [0, 192], sizes = [8, 64], strides = [1, 1]} : vector<8x256xf32> to vector<8x64xf32>
    %cst_121 = arith.constant 5.000000e-01 : f32
    %337 = vector.broadcast %cst_121 : f32 to vector<8x64xf32>
    %338 = arith.mulf %337, %336 : vector<8x64xf32>
    %339 = math.tanh %338 : vector<8x64xf32>
    %cst_122 = arith.constant 5.000000e-01 : f32
    %340 = vector.broadcast %cst_122 : f32 to vector<8x64xf32>
    %341 = arith.mulf %340, %339 : vector<8x64xf32>
    %cst_123 = arith.constant 5.000000e-01 : f32
    %342 = vector.broadcast %cst_123 : f32 to vector<8x64xf32>
    %343 = arith.addf %341, %342 : vector<8x64xf32>
    %344 = arith.mulf %333, %264 : vector<8x64xf32>
    %345 = arith.mulf %325, %335 : vector<8x64xf32>
    %346 = arith.addf %344, %345 : vector<8x64xf32>
    %347 = math.tanh %346 : vector<8x64xf32>
    %348 = arith.mulf %343, %347 : vector<8x64xf32>
    %c7_i32_124 = arith.constant 7 : i32
    %349 = arith.cmpi eq, %c3_i32, %c7_i32_124 : i32
    %350 = arith.select %349, %348, %268 : vector<8x64xf32>
    %c4_i32 = arith.constant 4 : i32
    %351 = vector.broadcast %c4_i32 : i32 to vector<8x8xi32>
    %352 = arith.cmpi eq, %4, %351 : vector<8x8xi32>
    %cst_125 = arith.constant 0.000000e+00 : f32
    %353 = vector.broadcast %cst_125 : f32 to vector<8x8xf32>
    %354 = arith.select %352, %3, %353 : vector<8x8xi1>, vector<8x8xf32>
    %cst_126 = arith.constant dense<0.000000e+00> : vector<8xf32>
    %355 = vector.multi_reduction <add>, %354, %cst_126 [1] : vector<8x8xf32> to vector<8xf32>
    %356 = vector.shape_cast %355 : vector<8xf32> to vector<8x1xf32>
    %357 = vector.broadcast %356 : vector<8x1xf32> to vector<8x256xf32>
    %358 = arith.mulf %357, %7 : vector<8x256xf32>
    %359 = arith.addf %358, %10 : vector<8x256xf32>
    %360 = arith.truncf %312 : vector<8x64xf32> to vector<8x64xbf16>
    %c0_127 = arith.constant 0 : index
    %c0_128 = arith.constant 0 : index
    %361 = vector.load %arg5[%c0_127, %c0_128] : memref<64x256xbf16, #tpu.memory_space<vmem>>, vector<64x256xbf16>
    %cst_129 = arith.constant dense<0.000000e+00> : vector<8x256xf32>
    %362 = tpu.matmul %360, %361, %cst_129 {dimension_numbers = #tpu.dot_dimension_numbers<[1], [0], [0], [1], [0, 0, 1, 1], [], []>} : vector<8x64xbf16>, vector<64x256xbf16>, vector<8x256xf32> -> vector<8x256xf32>
    %363 = arith.addf %359, %362 : vector<8x256xf32>
    %364 = vector.extract_strided_slice %363 {offsets = [0, 0], sizes = [8, 64], strides = [1, 1]} : vector<8x256xf32> to vector<8x64xf32>
    %cst_130 = arith.constant 5.000000e-01 : f32
    %365 = vector.broadcast %cst_130 : f32 to vector<8x64xf32>
    %366 = arith.mulf %365, %364 : vector<8x64xf32>
    %367 = math.tanh %366 : vector<8x64xf32>
    %cst_131 = arith.constant 5.000000e-01 : f32
    %368 = vector.broadcast %cst_131 : f32 to vector<8x64xf32>
    %369 = arith.mulf %368, %367 : vector<8x64xf32>
    %cst_132 = arith.constant 5.000000e-01 : f32
    %370 = vector.broadcast %cst_132 : f32 to vector<8x64xf32>
    %371 = arith.addf %369, %370 : vector<8x64xf32>
    %372 = vector.extract_strided_slice %363 {offsets = [0, 64], sizes = [8, 64], strides = [1, 1]} : vector<8x256xf32> to vector<8x64xf32>
    %cst_133 = arith.constant 5.000000e-01 : f32
    %373 = vector.broadcast %cst_133 : f32 to vector<8x64xf32>
    %374 = arith.mulf %373, %372 : vector<8x64xf32>
    %375 = math.tanh %374 : vector<8x64xf32>
    %cst_134 = arith.constant 5.000000e-01 : f32
    %376 = vector.broadcast %cst_134 : f32 to vector<8x64xf32>
    %377 = arith.mulf %376, %375 : vector<8x64xf32>
    %cst_135 = arith.constant 5.000000e-01 : f32
    %378 = vector.broadcast %cst_135 : f32 to vector<8x64xf32>
    %379 = arith.addf %377, %378 : vector<8x64xf32>
    %380 = vector.extract_strided_slice %363 {offsets = [0, 128], sizes = [8, 64], strides = [1, 1]} : vector<8x256xf32> to vector<8x64xf32>
    %381 = math.tanh %380 : vector<8x64xf32>
    %382 = vector.extract_strided_slice %363 {offsets = [0, 192], sizes = [8, 64], strides = [1, 1]} : vector<8x256xf32> to vector<8x64xf32>
    %cst_136 = arith.constant 5.000000e-01 : f32
    %383 = vector.broadcast %cst_136 : f32 to vector<8x64xf32>
    %384 = arith.mulf %383, %382 : vector<8x64xf32>
    %385 = math.tanh %384 : vector<8x64xf32>
    %cst_137 = arith.constant 5.000000e-01 : f32
    %386 = vector.broadcast %cst_137 : f32 to vector<8x64xf32>
    %387 = arith.mulf %386, %385 : vector<8x64xf32>
    %cst_138 = arith.constant 5.000000e-01 : f32
    %388 = vector.broadcast %cst_138 : f32 to vector<8x64xf32>
    %389 = arith.addf %387, %388 : vector<8x64xf32>
    %390 = arith.mulf %379, %310 : vector<8x64xf32>
    %391 = arith.mulf %371, %381 : vector<8x64xf32>
    %392 = arith.addf %390, %391 : vector<8x64xf32>
    %393 = math.tanh %392 : vector<8x64xf32>
    %394 = arith.mulf %389, %393 : vector<8x64xf32>
    %395 = tpu.concatenate %394, %348 in 1 : vector<8x64xf32>, vector<8x64xf32> -> vector<8x128xf32>
    %396 = arith.truncf %395 : vector<8x128xf32> to vector<8x128xbf16>
    %c0_139 = arith.constant 0 : index
    %c0_140 = arith.constant 0 : index
    %397 = vector.load %arg6[%c0_139, %c0_140] : memref<128x256xbf16, #tpu.memory_space<vmem>>, vector<128x256xbf16>
    %cst_141 = arith.constant dense<0.000000e+00> : vector<8x256xf32>
    %398 = tpu.matmul %396, %397, %cst_141 {dimension_numbers = #tpu.dot_dimension_numbers<[1], [0], [0], [1], [0, 0, 1, 1], [], []>} : vector<8x128xbf16>, vector<128x256xbf16>, vector<8x256xf32> -> vector<8x256xf32>
    %399 = arith.addf %398, %13 : vector<8x256xf32>
    %400 = vector.extract_strided_slice %399 {offsets = [0, 0], sizes = [8, 64], strides = [1, 1]} : vector<8x256xf32> to vector<8x64xf32>
    %cst_142 = arith.constant 5.000000e-01 : f32
    %401 = vector.broadcast %cst_142 : f32 to vector<8x64xf32>
    %402 = arith.mulf %401, %400 : vector<8x64xf32>
    %403 = math.tanh %402 : vector<8x64xf32>
    %cst_143 = arith.constant 5.000000e-01 : f32
    %404 = vector.broadcast %cst_143 : f32 to vector<8x64xf32>
    %405 = arith.mulf %404, %403 : vector<8x64xf32>
    %cst_144 = arith.constant 5.000000e-01 : f32
    %406 = vector.broadcast %cst_144 : f32 to vector<8x64xf32>
    %407 = arith.addf %405, %406 : vector<8x64xf32>
    %408 = vector.extract_strided_slice %399 {offsets = [0, 64], sizes = [8, 64], strides = [1, 1]} : vector<8x256xf32> to vector<8x64xf32>
    %cst_145 = arith.constant 5.000000e-01 : f32
    %409 = vector.broadcast %cst_145 : f32 to vector<8x64xf32>
    %410 = arith.mulf %409, %408 : vector<8x64xf32>
    %411 = math.tanh %410 : vector<8x64xf32>
    %cst_146 = arith.constant 5.000000e-01 : f32
    %412 = vector.broadcast %cst_146 : f32 to vector<8x64xf32>
    %413 = arith.mulf %412, %411 : vector<8x64xf32>
    %cst_147 = arith.constant 5.000000e-01 : f32
    %414 = vector.broadcast %cst_147 : f32 to vector<8x64xf32>
    %415 = arith.addf %413, %414 : vector<8x64xf32>
    %416 = vector.extract_strided_slice %399 {offsets = [0, 128], sizes = [8, 64], strides = [1, 1]} : vector<8x256xf32> to vector<8x64xf32>
    %417 = math.tanh %416 : vector<8x64xf32>
    %418 = vector.extract_strided_slice %399 {offsets = [0, 192], sizes = [8, 64], strides = [1, 1]} : vector<8x256xf32> to vector<8x64xf32>
    %cst_148 = arith.constant 5.000000e-01 : f32
    %419 = vector.broadcast %cst_148 : f32 to vector<8x64xf32>
    %420 = arith.mulf %419, %418 : vector<8x64xf32>
    %421 = math.tanh %420 : vector<8x64xf32>
    %cst_149 = arith.constant 5.000000e-01 : f32
    %422 = vector.broadcast %cst_149 : f32 to vector<8x64xf32>
    %423 = arith.mulf %422, %421 : vector<8x64xf32>
    %cst_150 = arith.constant 5.000000e-01 : f32
    %424 = vector.broadcast %cst_150 : f32 to vector<8x64xf32>
    %425 = arith.addf %423, %424 : vector<8x64xf32>
    %426 = arith.mulf %415, %346 : vector<8x64xf32>
    %427 = arith.mulf %407, %417 : vector<8x64xf32>
    %428 = arith.addf %426, %427 : vector<8x64xf32>
    %429 = math.tanh %428 : vector<8x64xf32>
    %430 = arith.mulf %425, %429 : vector<8x64xf32>
    %c7_i32_151 = arith.constant 7 : i32
    %431 = arith.cmpi eq, %c4_i32, %c7_i32_151 : i32
    %432 = arith.select %431, %430, %350 : vector<8x64xf32>
    %c5_i32 = arith.constant 5 : i32
    %433 = vector.broadcast %c5_i32 : i32 to vector<8x8xi32>
    %434 = arith.cmpi eq, %4, %433 : vector<8x8xi32>
    %cst_152 = arith.constant 0.000000e+00 : f32
    %435 = vector.broadcast %cst_152 : f32 to vector<8x8xf32>
    %436 = arith.select %434, %3, %435 : vector<8x8xi1>, vector<8x8xf32>
    %cst_153 = arith.constant dense<0.000000e+00> : vector<8xf32>
    %437 = vector.multi_reduction <add>, %436, %cst_153 [1] : vector<8x8xf32> to vector<8xf32>
    %438 = vector.shape_cast %437 : vector<8xf32> to vector<8x1xf32>
    %439 = vector.broadcast %438 : vector<8x1xf32> to vector<8x256xf32>
    %440 = arith.mulf %439, %7 : vector<8x256xf32>
    %441 = arith.addf %440, %10 : vector<8x256xf32>
    %442 = arith.truncf %394 : vector<8x64xf32> to vector<8x64xbf16>
    %c0_154 = arith.constant 0 : index
    %c0_155 = arith.constant 0 : index
    %443 = vector.load %arg5[%c0_154, %c0_155] : memref<64x256xbf16, #tpu.memory_space<vmem>>, vector<64x256xbf16>
    %cst_156 = arith.constant dense<0.000000e+00> : vector<8x256xf32>
    %444 = tpu.matmul %442, %443, %cst_156 {dimension_numbers = #tpu.dot_dimension_numbers<[1], [0], [0], [1], [0, 0, 1, 1], [], []>} : vector<8x64xbf16>, vector<64x256xbf16>, vector<8x256xf32> -> vector<8x256xf32>
    %445 = arith.addf %441, %444 : vector<8x256xf32>
    %446 = vector.extract_strided_slice %445 {offsets = [0, 0], sizes = [8, 64], strides = [1, 1]} : vector<8x256xf32> to vector<8x64xf32>
    %cst_157 = arith.constant 5.000000e-01 : f32
    %447 = vector.broadcast %cst_157 : f32 to vector<8x64xf32>
    %448 = arith.mulf %447, %446 : vector<8x64xf32>
    %449 = math.tanh %448 : vector<8x64xf32>
    %cst_158 = arith.constant 5.000000e-01 : f32
    %450 = vector.broadcast %cst_158 : f32 to vector<8x64xf32>
    %451 = arith.mulf %450, %449 : vector<8x64xf32>
    %cst_159 = arith.constant 5.000000e-01 : f32
    %452 = vector.broadcast %cst_159 : f32 to vector<8x64xf32>
    %453 = arith.addf %451, %452 : vector<8x64xf32>
    %454 = vector.extract_strided_slice %445 {offsets = [0, 64], sizes = [8, 64], strides = [1, 1]} : vector<8x256xf32> to vector<8x64xf32>
    %cst_160 = arith.constant 5.000000e-01 : f32
    %455 = vector.broadcast %cst_160 : f32 to vector<8x64xf32>
    %456 = arith.mulf %455, %454 : vector<8x64xf32>
    %457 = math.tanh %456 : vector<8x64xf32>
    %cst_161 = arith.constant 5.000000e-01 : f32
    %458 = vector.broadcast %cst_161 : f32 to vector<8x64xf32>
    %459 = arith.mulf %458, %457 : vector<8x64xf32>
    %cst_162 = arith.constant 5.000000e-01 : f32
    %460 = vector.broadcast %cst_162 : f32 to vector<8x64xf32>
    %461 = arith.addf %459, %460 : vector<8x64xf32>
    %462 = vector.extract_strided_slice %445 {offsets = [0, 128], sizes = [8, 64], strides = [1, 1]} : vector<8x256xf32> to vector<8x64xf32>
    %463 = math.tanh %462 : vector<8x64xf32>
    %464 = vector.extract_strided_slice %445 {offsets = [0, 192], sizes = [8, 64], strides = [1, 1]} : vector<8x256xf32> to vector<8x64xf32>
    %cst_163 = arith.constant 5.000000e-01 : f32
    %465 = vector.broadcast %cst_163 : f32 to vector<8x64xf32>
    %466 = arith.mulf %465, %464 : vector<8x64xf32>
    %467 = math.tanh %466 : vector<8x64xf32>
    %cst_164 = arith.constant 5.000000e-01 : f32
    %468 = vector.broadcast %cst_164 : f32 to vector<8x64xf32>
    %469 = arith.mulf %468, %467 : vector<8x64xf32>
    %cst_165 = arith.constant 5.000000e-01 : f32
    %470 = vector.broadcast %cst_165 : f32 to vector<8x64xf32>
    %471 = arith.addf %469, %470 : vector<8x64xf32>
    %472 = arith.mulf %461, %392 : vector<8x64xf32>
    %473 = arith.mulf %453, %463 : vector<8x64xf32>
    %474 = arith.addf %472, %473 : vector<8x64xf32>
    %475 = math.tanh %474 : vector<8x64xf32>
    %476 = arith.mulf %471, %475 : vector<8x64xf32>
    %477 = tpu.concatenate %476, %430 in 1 : vector<8x64xf32>, vector<8x64xf32> -> vector<8x128xf32>
    %478 = arith.truncf %477 : vector<8x128xf32> to vector<8x128xbf16>
    %c0_166 = arith.constant 0 : index
    %c0_167 = arith.constant 0 : index
    %479 = vector.load %arg6[%c0_166, %c0_167] : memref<128x256xbf16, #tpu.memory_space<vmem>>, vector<128x256xbf16>
    %cst_168 = arith.constant dense<0.000000e+00> : vector<8x256xf32>
    %480 = tpu.matmul %478, %479, %cst_168 {dimension_numbers = #tpu.dot_dimension_numbers<[1], [0], [0], [1], [0, 0, 1, 1], [], []>} : vector<8x128xbf16>, vector<128x256xbf16>, vector<8x256xf32> -> vector<8x256xf32>
    %481 = arith.addf %480, %13 : vector<8x256xf32>
    %482 = vector.extract_strided_slice %481 {offsets = [0, 0], sizes = [8, 64], strides = [1, 1]} : vector<8x256xf32> to vector<8x64xf32>
    %cst_169 = arith.constant 5.000000e-01 : f32
    %483 = vector.broadcast %cst_169 : f32 to vector<8x64xf32>
    %484 = arith.mulf %483, %482 : vector<8x64xf32>
    %485 = math.tanh %484 : vector<8x64xf32>
    %cst_170 = arith.constant 5.000000e-01 : f32
    %486 = vector.broadcast %cst_170 : f32 to vector<8x64xf32>
    %487 = arith.mulf %486, %485 : vector<8x64xf32>
    %cst_171 = arith.constant 5.000000e-01 : f32
    %488 = vector.broadcast %cst_171 : f32 to vector<8x64xf32>
    %489 = arith.addf %487, %488 : vector<8x64xf32>
    %490 = vector.extract_strided_slice %481 {offsets = [0, 64], sizes = [8, 64], strides = [1, 1]} : vector<8x256xf32> to vector<8x64xf32>
    %cst_172 = arith.constant 5.000000e-01 : f32
    %491 = vector.broadcast %cst_172 : f32 to vector<8x64xf32>
    %492 = arith.mulf %491, %490 : vector<8x64xf32>
    %493 = math.tanh %492 : vector<8x64xf32>
    %cst_173 = arith.constant 5.000000e-01 : f32
    %494 = vector.broadcast %cst_173 : f32 to vector<8x64xf32>
    %495 = arith.mulf %494, %493 : vector<8x64xf32>
    %cst_174 = arith.constant 5.000000e-01 : f32
    %496 = vector.broadcast %cst_174 : f32 to vector<8x64xf32>
    %497 = arith.addf %495, %496 : vector<8x64xf32>
    %498 = vector.extract_strided_slice %481 {offsets = [0, 128], sizes = [8, 64], strides = [1, 1]} : vector<8x256xf32> to vector<8x64xf32>
    %499 = math.tanh %498 : vector<8x64xf32>
    %500 = vector.extract_strided_slice %481 {offsets = [0, 192], sizes = [8, 64], strides = [1, 1]} : vector<8x256xf32> to vector<8x64xf32>
    %cst_175 = arith.constant 5.000000e-01 : f32
    %501 = vector.broadcast %cst_175 : f32 to vector<8x64xf32>
    %502 = arith.mulf %501, %500 : vector<8x64xf32>
    %503 = math.tanh %502 : vector<8x64xf32>
    %cst_176 = arith.constant 5.000000e-01 : f32
    %504 = vector.broadcast %cst_176 : f32 to vector<8x64xf32>
    %505 = arith.mulf %504, %503 : vector<8x64xf32>
    %cst_177 = arith.constant 5.000000e-01 : f32
    %506 = vector.broadcast %cst_177 : f32 to vector<8x64xf32>
    %507 = arith.addf %505, %506 : vector<8x64xf32>
    %508 = arith.mulf %497, %428 : vector<8x64xf32>
    %509 = arith.mulf %489, %499 : vector<8x64xf32>
    %510 = arith.addf %508, %509 : vector<8x64xf32>
    %511 = math.tanh %510 : vector<8x64xf32>
    %512 = arith.mulf %507, %511 : vector<8x64xf32>
    %c7_i32_178 = arith.constant 7 : i32
    %513 = arith.cmpi eq, %c5_i32, %c7_i32_178 : i32
    %514 = arith.select %513, %512, %432 : vector<8x64xf32>
    %c6_i32 = arith.constant 6 : i32
    %515 = vector.broadcast %c6_i32 : i32 to vector<8x8xi32>
    %516 = arith.cmpi eq, %4, %515 : vector<8x8xi32>
    %cst_179 = arith.constant 0.000000e+00 : f32
    %517 = vector.broadcast %cst_179 : f32 to vector<8x8xf32>
    %518 = arith.select %516, %3, %517 : vector<8x8xi1>, vector<8x8xf32>
    %cst_180 = arith.constant dense<0.000000e+00> : vector<8xf32>
    %519 = vector.multi_reduction <add>, %518, %cst_180 [1] : vector<8x8xf32> to vector<8xf32>
    %520 = vector.shape_cast %519 : vector<8xf32> to vector<8x1xf32>
    %521 = vector.broadcast %520 : vector<8x1xf32> to vector<8x256xf32>
    %522 = arith.mulf %521, %7 : vector<8x256xf32>
    %523 = arith.addf %522, %10 : vector<8x256xf32>
    %524 = arith.truncf %476 : vector<8x64xf32> to vector<8x64xbf16>
    %c0_181 = arith.constant 0 : index
    %c0_182 = arith.constant 0 : index
    %525 = vector.load %arg5[%c0_181, %c0_182] : memref<64x256xbf16, #tpu.memory_space<vmem>>, vector<64x256xbf16>
    %cst_183 = arith.constant dense<0.000000e+00> : vector<8x256xf32>
    %526 = tpu.matmul %524, %525, %cst_183 {dimension_numbers = #tpu.dot_dimension_numbers<[1], [0], [0], [1], [0, 0, 1, 1], [], []>} : vector<8x64xbf16>, vector<64x256xbf16>, vector<8x256xf32> -> vector<8x256xf32>
    %527 = arith.addf %523, %526 : vector<8x256xf32>
    %528 = vector.extract_strided_slice %527 {offsets = [0, 0], sizes = [8, 64], strides = [1, 1]} : vector<8x256xf32> to vector<8x64xf32>
    %cst_184 = arith.constant 5.000000e-01 : f32
    %529 = vector.broadcast %cst_184 : f32 to vector<8x64xf32>
    %530 = arith.mulf %529, %528 : vector<8x64xf32>
    %531 = math.tanh %530 : vector<8x64xf32>
    %cst_185 = arith.constant 5.000000e-01 : f32
    %532 = vector.broadcast %cst_185 : f32 to vector<8x64xf32>
    %533 = arith.mulf %532, %531 : vector<8x64xf32>
    %cst_186 = arith.constant 5.000000e-01 : f32
    %534 = vector.broadcast %cst_186 : f32 to vector<8x64xf32>
    %535 = arith.addf %533, %534 : vector<8x64xf32>
    %536 = vector.extract_strided_slice %527 {offsets = [0, 64], sizes = [8, 64], strides = [1, 1]} : vector<8x256xf32> to vector<8x64xf32>
    %cst_187 = arith.constant 5.000000e-01 : f32
    %537 = vector.broadcast %cst_187 : f32 to vector<8x64xf32>
    %538 = arith.mulf %537, %536 : vector<8x64xf32>
    %539 = math.tanh %538 : vector<8x64xf32>
    %cst_188 = arith.constant 5.000000e-01 : f32
    %540 = vector.broadcast %cst_188 : f32 to vector<8x64xf32>
    %541 = arith.mulf %540, %539 : vector<8x64xf32>
    %cst_189 = arith.constant 5.000000e-01 : f32
    %542 = vector.broadcast %cst_189 : f32 to vector<8x64xf32>
    %543 = arith.addf %541, %542 : vector<8x64xf32>
    %544 = vector.extract_strided_slice %527 {offsets = [0, 128], sizes = [8, 64], strides = [1, 1]} : vector<8x256xf32> to vector<8x64xf32>
    %545 = math.tanh %544 : vector<8x64xf32>
    %546 = vector.extract_strided_slice %527 {offsets = [0, 192], sizes = [8, 64], strides = [1, 1]} : vector<8x256xf32> to vector<8x64xf32>
    %cst_190 = arith.constant 5.000000e-01 : f32
    %547 = vector.broadcast %cst_190 : f32 to vector<8x64xf32>
    %548 = arith.mulf %547, %546 : vector<8x64xf32>
    %549 = math.tanh %548 : vector<8x64xf32>
    %cst_191 = arith.constant 5.000000e-01 : f32
    %550 = vector.broadcast %cst_191 : f32 to vector<8x64xf32>
    %551 = arith.mulf %550, %549 : vector<8x64xf32>
    %cst_192 = arith.constant 5.000000e-01 : f32
    %552 = vector.broadcast %cst_192 : f32 to vector<8x64xf32>
    %553 = arith.addf %551, %552 : vector<8x64xf32>
    %554 = arith.mulf %543, %474 : vector<8x64xf32>
    %555 = arith.mulf %535, %545 : vector<8x64xf32>
    %556 = arith.addf %554, %555 : vector<8x64xf32>
    %557 = math.tanh %556 : vector<8x64xf32>
    %558 = arith.mulf %553, %557 : vector<8x64xf32>
    %559 = tpu.concatenate %558, %512 in 1 : vector<8x64xf32>, vector<8x64xf32> -> vector<8x128xf32>
    %560 = arith.truncf %559 : vector<8x128xf32> to vector<8x128xbf16>
    %c0_193 = arith.constant 0 : index
    %c0_194 = arith.constant 0 : index
    %561 = vector.load %arg6[%c0_193, %c0_194] : memref<128x256xbf16, #tpu.memory_space<vmem>>, vector<128x256xbf16>
    %cst_195 = arith.constant dense<0.000000e+00> : vector<8x256xf32>
    %562 = tpu.matmul %560, %561, %cst_195 {dimension_numbers = #tpu.dot_dimension_numbers<[1], [0], [0], [1], [0, 0, 1, 1], [], []>} : vector<8x128xbf16>, vector<128x256xbf16>, vector<8x256xf32> -> vector<8x256xf32>
    %563 = arith.addf %562, %13 : vector<8x256xf32>
    %564 = vector.extract_strided_slice %563 {offsets = [0, 0], sizes = [8, 64], strides = [1, 1]} : vector<8x256xf32> to vector<8x64xf32>
    %cst_196 = arith.constant 5.000000e-01 : f32
    %565 = vector.broadcast %cst_196 : f32 to vector<8x64xf32>
    %566 = arith.mulf %565, %564 : vector<8x64xf32>
    %567 = math.tanh %566 : vector<8x64xf32>
    %cst_197 = arith.constant 5.000000e-01 : f32
    %568 = vector.broadcast %cst_197 : f32 to vector<8x64xf32>
    %569 = arith.mulf %568, %567 : vector<8x64xf32>
    %cst_198 = arith.constant 5.000000e-01 : f32
    %570 = vector.broadcast %cst_198 : f32 to vector<8x64xf32>
    %571 = arith.addf %569, %570 : vector<8x64xf32>
    %572 = vector.extract_strided_slice %563 {offsets = [0, 64], sizes = [8, 64], strides = [1, 1]} : vector<8x256xf32> to vector<8x64xf32>
    %cst_199 = arith.constant 5.000000e-01 : f32
    %573 = vector.broadcast %cst_199 : f32 to vector<8x64xf32>
    %574 = arith.mulf %573, %572 : vector<8x64xf32>
    %575 = math.tanh %574 : vector<8x64xf32>
    %cst_200 = arith.constant 5.000000e-01 : f32
    %576 = vector.broadcast %cst_200 : f32 to vector<8x64xf32>
    %577 = arith.mulf %576, %575 : vector<8x64xf32>
    %cst_201 = arith.constant 5.000000e-01 : f32
    %578 = vector.broadcast %cst_201 : f32 to vector<8x64xf32>
    %579 = arith.addf %577, %578 : vector<8x64xf32>
    %580 = vector.extract_strided_slice %563 {offsets = [0, 128], sizes = [8, 64], strides = [1, 1]} : vector<8x256xf32> to vector<8x64xf32>
    %581 = math.tanh %580 : vector<8x64xf32>
    %582 = vector.extract_strided_slice %563 {offsets = [0, 192], sizes = [8, 64], strides = [1, 1]} : vector<8x256xf32> to vector<8x64xf32>
    %cst_202 = arith.constant 5.000000e-01 : f32
    %583 = vector.broadcast %cst_202 : f32 to vector<8x64xf32>
    %584 = arith.mulf %583, %582 : vector<8x64xf32>
    %585 = math.tanh %584 : vector<8x64xf32>
    %cst_203 = arith.constant 5.000000e-01 : f32
    %586 = vector.broadcast %cst_203 : f32 to vector<8x64xf32>
    %587 = arith.mulf %586, %585 : vector<8x64xf32>
    %cst_204 = arith.constant 5.000000e-01 : f32
    %588 = vector.broadcast %cst_204 : f32 to vector<8x64xf32>
    %589 = arith.addf %587, %588 : vector<8x64xf32>
    %590 = arith.mulf %579, %510 : vector<8x64xf32>
    %591 = arith.mulf %571, %581 : vector<8x64xf32>
    %592 = arith.addf %590, %591 : vector<8x64xf32>
    %593 = math.tanh %592 : vector<8x64xf32>
    %594 = arith.mulf %589, %593 : vector<8x64xf32>
    %c7_i32_205 = arith.constant 7 : i32
    %595 = arith.cmpi eq, %c6_i32, %c7_i32_205 : i32
    %596 = arith.select %595, %594, %514 : vector<8x64xf32>
    %c7_i32_206 = arith.constant 7 : i32
    %597 = vector.broadcast %c7_i32_206 : i32 to vector<8x8xi32>
    %598 = arith.cmpi eq, %4, %597 : vector<8x8xi32>
    %cst_207 = arith.constant 0.000000e+00 : f32
    %599 = vector.broadcast %cst_207 : f32 to vector<8x8xf32>
    %600 = arith.select %598, %3, %599 : vector<8x8xi1>, vector<8x8xf32>
    %cst_208 = arith.constant dense<0.000000e+00> : vector<8xf32>
    %601 = vector.multi_reduction <add>, %600, %cst_208 [1] : vector<8x8xf32> to vector<8xf32>
    %602 = vector.shape_cast %601 : vector<8xf32> to vector<8x1xf32>
    %603 = vector.broadcast %602 : vector<8x1xf32> to vector<8x256xf32>
    %604 = arith.mulf %603, %7 : vector<8x256xf32>
    %605 = arith.addf %604, %10 : vector<8x256xf32>
    %606 = arith.truncf %558 : vector<8x64xf32> to vector<8x64xbf16>
    %c0_209 = arith.constant 0 : index
    %c0_210 = arith.constant 0 : index
    %607 = vector.load %arg5[%c0_209, %c0_210] : memref<64x256xbf16, #tpu.memory_space<vmem>>, vector<64x256xbf16>
    %cst_211 = arith.constant dense<0.000000e+00> : vector<8x256xf32>
    %608 = tpu.matmul %606, %607, %cst_211 {dimension_numbers = #tpu.dot_dimension_numbers<[1], [0], [0], [1], [0, 0, 1, 1], [], []>} : vector<8x64xbf16>, vector<64x256xbf16>, vector<8x256xf32> -> vector<8x256xf32>
    %609 = arith.addf %605, %608 : vector<8x256xf32>
    %610 = vector.extract_strided_slice %609 {offsets = [0, 0], sizes = [8, 64], strides = [1, 1]} : vector<8x256xf32> to vector<8x64xf32>
    %cst_212 = arith.constant 5.000000e-01 : f32
    %611 = vector.broadcast %cst_212 : f32 to vector<8x64xf32>
    %612 = arith.mulf %611, %610 : vector<8x64xf32>
    %613 = math.tanh %612 : vector<8x64xf32>
    %cst_213 = arith.constant 5.000000e-01 : f32
    %614 = vector.broadcast %cst_213 : f32 to vector<8x64xf32>
    %615 = arith.mulf %614, %613 : vector<8x64xf32>
    %cst_214 = arith.constant 5.000000e-01 : f32
    %616 = vector.broadcast %cst_214 : f32 to vector<8x64xf32>
    %617 = arith.addf %615, %616 : vector<8x64xf32>
    %618 = vector.extract_strided_slice %609 {offsets = [0, 64], sizes = [8, 64], strides = [1, 1]} : vector<8x256xf32> to vector<8x64xf32>
    %cst_215 = arith.constant 5.000000e-01 : f32
    %619 = vector.broadcast %cst_215 : f32 to vector<8x64xf32>
    %620 = arith.mulf %619, %618 : vector<8x64xf32>
    %621 = math.tanh %620 : vector<8x64xf32>
    %cst_216 = arith.constant 5.000000e-01 : f32
    %622 = vector.broadcast %cst_216 : f32 to vector<8x64xf32>
    %623 = arith.mulf %622, %621 : vector<8x64xf32>
    %cst_217 = arith.constant 5.000000e-01 : f32
    %624 = vector.broadcast %cst_217 : f32 to vector<8x64xf32>
    %625 = arith.addf %623, %624 : vector<8x64xf32>
    %626 = vector.extract_strided_slice %609 {offsets = [0, 128], sizes = [8, 64], strides = [1, 1]} : vector<8x256xf32> to vector<8x64xf32>
    %627 = math.tanh %626 : vector<8x64xf32>
    %628 = vector.extract_strided_slice %609 {offsets = [0, 192], sizes = [8, 64], strides = [1, 1]} : vector<8x256xf32> to vector<8x64xf32>
    %cst_218 = arith.constant 5.000000e-01 : f32
    %629 = vector.broadcast %cst_218 : f32 to vector<8x64xf32>
    %630 = arith.mulf %629, %628 : vector<8x64xf32>
    %631 = math.tanh %630 : vector<8x64xf32>
    %cst_219 = arith.constant 5.000000e-01 : f32
    %632 = vector.broadcast %cst_219 : f32 to vector<8x64xf32>
    %633 = arith.mulf %632, %631 : vector<8x64xf32>
    %cst_220 = arith.constant 5.000000e-01 : f32
    %634 = vector.broadcast %cst_220 : f32 to vector<8x64xf32>
    %635 = arith.addf %633, %634 : vector<8x64xf32>
    %636 = arith.mulf %625, %556 : vector<8x64xf32>
    %637 = arith.mulf %617, %627 : vector<8x64xf32>
    %638 = arith.addf %636, %637 : vector<8x64xf32>
    %639 = math.tanh %638 : vector<8x64xf32>
    %640 = arith.mulf %635, %639 : vector<8x64xf32>
    %641 = tpu.concatenate %640, %594 in 1 : vector<8x64xf32>, vector<8x64xf32> -> vector<8x128xf32>
    %642 = arith.truncf %641 : vector<8x128xf32> to vector<8x128xbf16>
    %c0_221 = arith.constant 0 : index
    %c0_222 = arith.constant 0 : index
    %643 = vector.load %arg6[%c0_221, %c0_222] : memref<128x256xbf16, #tpu.memory_space<vmem>>, vector<128x256xbf16>
    %cst_223 = arith.constant dense<0.000000e+00> : vector<8x256xf32>
    %644 = tpu.matmul %642, %643, %cst_223 {dimension_numbers = #tpu.dot_dimension_numbers<[1], [0], [0], [1], [0, 0, 1, 1], [], []>} : vector<8x128xbf16>, vector<128x256xbf16>, vector<8x256xf32> -> vector<8x256xf32>
    %645 = arith.addf %644, %13 : vector<8x256xf32>
    %646 = vector.extract_strided_slice %645 {offsets = [0, 0], sizes = [8, 64], strides = [1, 1]} : vector<8x256xf32> to vector<8x64xf32>
    %cst_224 = arith.constant 5.000000e-01 : f32
    %647 = vector.broadcast %cst_224 : f32 to vector<8x64xf32>
    %648 = arith.mulf %647, %646 : vector<8x64xf32>
    %649 = math.tanh %648 : vector<8x64xf32>
    %cst_225 = arith.constant 5.000000e-01 : f32
    %650 = vector.broadcast %cst_225 : f32 to vector<8x64xf32>
    %651 = arith.mulf %650, %649 : vector<8x64xf32>
    %cst_226 = arith.constant 5.000000e-01 : f32
    %652 = vector.broadcast %cst_226 : f32 to vector<8x64xf32>
    %653 = arith.addf %651, %652 : vector<8x64xf32>
    %654 = vector.extract_strided_slice %645 {offsets = [0, 64], sizes = [8, 64], strides = [1, 1]} : vector<8x256xf32> to vector<8x64xf32>
    %cst_227 = arith.constant 5.000000e-01 : f32
    %655 = vector.broadcast %cst_227 : f32 to vector<8x64xf32>
    %656 = arith.mulf %655, %654 : vector<8x64xf32>
    %657 = math.tanh %656 : vector<8x64xf32>
    %cst_228 = arith.constant 5.000000e-01 : f32
    %658 = vector.broadcast %cst_228 : f32 to vector<8x64xf32>
    %659 = arith.mulf %658, %657 : vector<8x64xf32>
    %cst_229 = arith.constant 5.000000e-01 : f32
    %660 = vector.broadcast %cst_229 : f32 to vector<8x64xf32>
    %661 = arith.addf %659, %660 : vector<8x64xf32>
    %662 = vector.extract_strided_slice %645 {offsets = [0, 128], sizes = [8, 64], strides = [1, 1]} : vector<8x256xf32> to vector<8x64xf32>
    %663 = math.tanh %662 : vector<8x64xf32>
    %664 = vector.extract_strided_slice %645 {offsets = [0, 192], sizes = [8, 64], strides = [1, 1]} : vector<8x256xf32> to vector<8x64xf32>
    %cst_230 = arith.constant 5.000000e-01 : f32
    %665 = vector.broadcast %cst_230 : f32 to vector<8x64xf32>
    %666 = arith.mulf %665, %664 : vector<8x64xf32>
    %667 = math.tanh %666 : vector<8x64xf32>
    %cst_231 = arith.constant 5.000000e-01 : f32
    %668 = vector.broadcast %cst_231 : f32 to vector<8x64xf32>
    %669 = arith.mulf %668, %667 : vector<8x64xf32>
    %cst_232 = arith.constant 5.000000e-01 : f32
    %670 = vector.broadcast %cst_232 : f32 to vector<8x64xf32>
    %671 = arith.addf %669, %670 : vector<8x64xf32>
    %672 = arith.mulf %661, %592 : vector<8x64xf32>
    %673 = arith.mulf %653, %663 : vector<8x64xf32>
    %674 = arith.addf %672, %673 : vector<8x64xf32>
    %675 = math.tanh %674 : vector<8x64xf32>
    %676 = arith.mulf %671, %675 : vector<8x64xf32>
    %c7_i32_233 = arith.constant 7 : i32
    %677 = arith.cmpi eq, %c7_i32_206, %c7_i32_233 : i32
    %678 = arith.select %677, %676, %596 : vector<8x64xf32>
    %c8_i32 = arith.constant 8 : i32
    %c0_234 = arith.constant 0 : index
    %c0_235 = arith.constant 0 : index
    %c0_236 = arith.constant 0 : index
    %679 = vector.load %arg11[%c0_234, %c0_235, %c0_236] : memref<4x8x64xf32, #tpu.memory_space<vmem>>, vector<1x8x64xf32>
    %680 = vector.shape_cast %679 : vector<1x8x64xf32> to vector<8x64xf32>
    %681 = vector.shape_cast %640 : vector<8x64xf32> to vector<1x8x64xf32>
    tpu.vector_store %arg11[%c0_234, %c0_235, %c0_236], %681 {strides = array<i32>} : memref<4x8x64xf32, #tpu.memory_space<vmem>>, vector<1x8x64xf32>,
    %c1_237 = arith.constant 1 : index
    %c0_238 = arith.constant 0 : index
    %c0_239 = arith.constant 0 : index
    %682 = vector.load %arg11[%c1_237, %c0_238, %c0_239] : memref<4x8x64xf32, #tpu.memory_space<vmem>>, vector<1x8x64xf32>
    %683 = vector.shape_cast %682 : vector<1x8x64xf32> to vector<8x64xf32>
    %684 = vector.shape_cast %638 : vector<8x64xf32> to vector<1x8x64xf32>
    tpu.vector_store %arg11[%c1_237, %c0_238, %c0_239], %684 {strides = array<i32>} : memref<4x8x64xf32, #tpu.memory_space<vmem>>, vector<1x8x64xf32>,
    %c2_240 = arith.constant 2 : index
    %c0_241 = arith.constant 0 : index
    %c0_242 = arith.constant 0 : index
    %685 = vector.load %arg11[%c2_240, %c0_241, %c0_242] : memref<4x8x64xf32, #tpu.memory_space<vmem>>, vector<1x8x64xf32>
    %686 = vector.shape_cast %685 : vector<1x8x64xf32> to vector<8x64xf32>
    %687 = vector.shape_cast %676 : vector<8x64xf32> to vector<1x8x64xf32>
    tpu.vector_store %arg11[%c2_240, %c0_241, %c0_242], %687 {strides = array<i32>} : memref<4x8x64xf32, #tpu.memory_space<vmem>>, vector<1x8x64xf32>,
    %c3_243 = arith.constant 3 : index
    %c0_244 = arith.constant 0 : index
    %c0_245 = arith.constant 0 : index
    %688 = vector.load %arg11[%c3_243, %c0_244, %c0_245] : memref<4x8x64xf32, #tpu.memory_space<vmem>>, vector<1x8x64xf32>
    %689 = vector.shape_cast %688 : vector<1x8x64xf32> to vector<8x64xf32>
    %690 = vector.shape_cast %674 : vector<8x64xf32> to vector<1x8x64xf32>
    tpu.vector_store %arg11[%c3_243, %c0_244, %c0_245], %690 {strides = array<i32>} : memref<4x8x64xf32, #tpu.memory_space<vmem>>, vector<1x8x64xf32>,
    %c0_i32_246 = arith.constant 0 : i32
    %691 = arith.cmpi eq, %arg1, %c0_i32_246 : i32
    %692 = arith.extui %691 : i1 to i32
    %c0_i32_247 = arith.constant 0 : i32
    %693 = arith.cmpi ne, %692, %c0_i32_247 : i32
    scf.if %693 {
      %c0_248 = arith.constant 0 : index
      %c0_249 = arith.constant 0 : index
      %694 = vector.load %arg8[%c0_248, %c0_249] : memref<2x64xf32, #tpu.memory_space<vmem>>, vector<1x64xf32>
      %695 = vector.broadcast %694 : vector<1x64xf32> to vector<8x64xf32>
      %696 = arith.mulf %678, %695 : vector<8x64xf32>
      %cst_250 = arith.constant dense<0.000000e+00> : vector<8xf32>
      %697 = vector.multi_reduction <add>, %696, %cst_250 [1] : vector<8x64xf32> to vector<8xf32>
      %698 = vector.shape_cast %697 : vector<8xf32> to vector<8x1xf32>
      %c0_251 = arith.constant 0 : index
      %c0_252 = arith.constant 0 : index
      %699 = vector.load %arg9[%c0_251, %c0_252] : memref<1x2xf32, #tpu.memory_space<vmem>>, vector<1x1xf32>
      %700 = vector.broadcast %699 : vector<1x1xf32> to vector<8x1xf32>
      %701 = arith.addf %698, %700 : vector<8x1xf32>
      %c1_253 = arith.constant 1 : index
      %c0_254 = arith.constant 0 : index
      %702 = vector.load %arg8[%c1_253, %c0_254] : memref<2x64xf32, #tpu.memory_space<vmem>>, vector<1x64xf32>
      %703 = vector.broadcast %702 : vector<1x64xf32> to vector<8x64xf32>
      %704 = arith.mulf %678, %703 : vector<8x64xf32>
      %cst_255 = arith.constant dense<0.000000e+00> : vector<8xf32>
      %705 = vector.multi_reduction <add>, %704, %cst_255 [1] : vector<8x64xf32> to vector<8xf32>
      %706 = vector.shape_cast %705 : vector<8xf32> to vector<8x1xf32>
      %c0_256 = arith.constant 0 : index
      %c1_257 = arith.constant 1 : index
      %707 = vector.load %arg9[%c0_256, %c1_257] : memref<1x2xf32, #tpu.memory_space<vmem>>, vector<1x1xf32>
      %708 = vector.broadcast %707 : vector<1x1xf32> to vector<8x1xf32>
      %709 = arith.addf %706, %708 : vector<8x1xf32>
      %710 = math.exp %701 : vector<8x1xf32>
      %711 = math.exp %709 : vector<8x1xf32>
      %712 = tpu.concatenate %710, %711 in 1 : vector<8x1xf32>, vector<8x1xf32> -> vector<8x2xf32>
      %c0_258 = arith.constant 0 : index
      %c0_259 = arith.constant 0 : index
      %713 = vector.load %arg10[%c0_258, %c0_259] : memref<8x2xf32, #tpu.memory_space<vmem>>, vector<8x2xf32>
      tpu.vector_store %arg10[%c0_258, %c0_259], %712 {strides = array<i32>} : memref<8x2xf32, #tpu.memory_space<vmem>>, vector<8x2xf32>,
    } else {
    }
    return
  }
  func.func @transform_0(%arg0: i32, %arg1: i32) -> (i32, i32) {
    %c0_i32 = arith.constant 0 : i32
    return %arg0, %arg1 : i32, i32
  }
  func.func @transform_1(%arg0: i32, %arg1: i32) -> (i32, i32) {
    %c0_i32 = arith.constant 0 : i32
    %c0_i32_0 = arith.constant 0 : i32
    %c0_i32_1 = arith.constant 0 : i32
    return %c0_i32, %c0_i32_0 : i32, i32
  }
  func.func @transform_2(%arg0: i32, %arg1: i32) -> (i32, i32) {
    %c0_i32 = arith.constant 0 : i32
    %c0_i32_0 = arith.constant 0 : i32
    %c0_i32_1 = arith.constant 0 : i32
    return %c0_i32, %c0_i32_0 : i32, i32
  }
  func.func @transform_3(%arg0: i32, %arg1: i32) -> (i32, i32) {
    %c0_i32 = arith.constant 0 : i32
    %c0_i32_0 = arith.constant 0 : i32
    %c0_i32_1 = arith.constant 0 : i32
    return %c0_i32, %c0_i32_0 : i32, i32
  }
  func.func @transform_4(%arg0: i32, %arg1: i32) -> (i32, i32) {
    %c0_i32 = arith.constant 0 : i32
    %c0_i32_0 = arith.constant 0 : i32
    %c0_i32_1 = arith.constant 0 : i32
    return %c0_i32, %c0_i32_0 : i32, i32
  }
  func.func @transform_5(%arg0: i32, %arg1: i32) -> (i32, i32) {
    %c0_i32 = arith.constant 0 : i32
    %c0_i32_0 = arith.constant 0 : i32
    %c0_i32_1 = arith.constant 0 : i32
    return %c0_i32, %c0_i32_0 : i32, i32
  }
  func.func @transform_6(%arg0: i32, %arg1: i32) -> (i32, i32) {
    %c0_i32 = arith.constant 0 : i32
    %c0_i32_0 = arith.constant 0 : i32
    %c0_i32_1 = arith.constant 0 : i32
    return %c0_i32, %c0_i32_0 : i32, i32
  }
  func.func @transform_7(%arg0: i32, %arg1: i32) -> (i32, i32) {
    %c0_i32 = arith.constant 0 : i32
    %c0_i32_0 = arith.constant 0 : i32
    %c0_i32_1 = arith.constant 0 : i32
    return %c0_i32, %c0_i32_0 : i32, i32
  }
  func.func @transform_8(%arg0: i32, %arg1: i32) -> (i32, i32) {
    %c0_i32 = arith.constant 0 : i32
    %c0_i32_0 = arith.constant 0 : i32
    return %arg0, %c0_i32 : i32, i32
  }
}

</mosaic_0001>

<llo_original>
// kernel: tpu_custom_call.1
$region0: #{tpu_custom_call.1}
  #allocation0 [shape = 'u32[]', space=smem, size = 0x4, offset = 0x4, fixed_abs, tag = 'smem constant byte address 0x4 - core index']
  #allocation1 [shape = 'u32[144,128]{1,0:T(1,128)}', space=vmem, size = 0x12000, scoped, tag = 'internal scratch']
  #allocation2 [shape = 'f32[4,8,64]{2,1,0:T(8,128)}', space=vmem, size = 0x4000, scoped, tag = 'scratch operand']
  %s0 = inlined_call_operand.hbm [shape: f32[8,8], index: 0, kind: input, shape index: {}]
  %s1 = inlined_call_operand.vmem [shape: f32[1,256], index: 1, kind: input, shape index: {}]
  %s2 = inlined_call_operand.vmem [shape: f32[1,256], index: 2, kind: input, shape index: {}]
  %s3 = inlined_call_operand.hbm [shape: bf16[64,256], index: 3, kind: input, shape index: {}]
  %s4 = inlined_call_operand.hbm [shape: bf16[128,256], index: 4, kind: input, shape index: {}]
  %s5 = inlined_call_operand.vmem [shape: f32[1,256], index: 5, kind: input, shape index: {}]
  %s6 = inlined_call_operand.vmem [shape: f32[2,64], index: 6, kind: input, shape index: {}]
  %s7 = inlined_call_operand.vmem [shape: f32[1,2], index: 7, kind: input, shape index: {}]
  %s8 = inlined_call_operand.vmem [shape: f32[8,2], index: 8, kind: output, shape index: {}]
  %s9 = sld [smem:[#allocation0]]
  $region62: #{tpu_custom_call.1} parent=0
    _
  %s11 = ssub.s32 1, %s9
  %s12 = scalar_select 0, %s11, %s9
  $region1: #{tpu_custom_call.1} parent=0
    #allocation3 [shape = 'u8[4096]{0}', space=vmem, size = 0x1000, scoped, tag = 'input window, operand 0, single buffered']
    #allocation4 [shape = 's32[1]{0}', space=sflag, size = 0x4, scoped, tag = 'scoped memory for tpu_custom_call.1']
    #allocation5 [shape = 'u8[32768]{0}', space=vmem, size = 0x8000, scoped, tag = 'input window, operand 3, single buffered']
    #allocation6 [shape = 's32[1]{0}', space=sflag, size = 0x4, scoped, tag = 'scoped memory for tpu_custom_call.1']
    #allocation7 [shape = 'u8[65536]{0}', space=vmem, size = 0x10000, scoped, tag = 'input window, operand 4, single buffered']
    %13 = vsyncpa [#allocation4], 0
    %14 = vsyncpa [#allocation6], 0
    // Predicated region
    $region2: #{tpu_custom_call.1} parent=1 // pred_check
      _
    $region3: #{tpu_custom_call.1} parent=1 // pred_check_branch
      %16 = sbr.rel (0) target = $region5
    $region4: #{tpu_custom_call.1} parent=1 // pred_region
      %s18 = ssub.s32 128, 128
      %19 = vsyncadd [#allocation4], %s18
      %s21 = sshll.u32 [#allocation3], 4
      %s22 = int_to_ptr.vmem [resolvable:$true] %s21
      %24 = dma.hbm_to_vmem [thread:$0]  %s0, 128, %s22, [#allocation4]
    $region5: #{tpu_custom_call.1} parent=1 // pred_fallthru
      _
    // Predicated region
    $region6: #{tpu_custom_call.1} parent=1 // pred_check
      _
    $region7: #{tpu_custom_call.1} parent=1 // pred_check_branch
      %26 = sbr.rel (0) target = $region9
    $region8: #{tpu_custom_call.1} parent=1 // pred_region
      _
    $region9: #{tpu_custom_call.1} parent=1 // pred_fallthru
      _
    // Predicated region
    $region10: #{tpu_custom_call.1} parent=1 // pred_check
      _
    $region11: #{tpu_custom_call.1} parent=1 // pred_check_branch
      %28 = sbr.rel (0) target = $region13
    $region12: #{tpu_custom_call.1} parent=1 // pred_region
      _
    $region13: #{tpu_custom_call.1} parent=1 // pred_fallthru
      _
    // Predicated region
    $region14: #{tpu_custom_call.1} parent=1 // pred_check
      _
    $region15: #{tpu_custom_call.1} parent=1 // pred_check_branch
      %30 = sbr.rel (0) target = $region17
    $region16: #{tpu_custom_call.1} parent=1 // pred_region
      %s32 = ssub.s32 1024, 1024
      %33 = vsyncadd [#allocation6], %s32
      %s34 = sshll.u32 [#allocation5], 4
      %s35 = int_to_ptr.vmem [resolvable:$true] %s34
      %40 = dma.hbm_to_vmem [thread:$0]  %s3, 1024, %s35, [#allocation6], 128, 128, 8
    $region17: #{tpu_custom_call.1} parent=1 // pred_fallthru
      _
    // Predicated region
    $region18: #{tpu_custom_call.1} parent=1 // pred_check
      _
    $region19: #{tpu_custom_call.1} parent=1 // pred_check_branch
      %42 = sbr.rel (0) target = $region21
    $region20: #{tpu_custom_call.1} parent=1 // pred_region
      %s44 = ssub.s32 2048, 2048
      %45 = vsyncadd [#allocation6], %s44
      %s46 = sshll.u32 [#allocation7], 4
      %s47 = int_to_ptr.vmem [resolvable:$true] %s46
      %52 = dma.hbm_to_vmem [thread:$0]  %s4, 2048, %s47, [#allocation6], 128, 128, 8
    $region21: #{tpu_custom_call.1} parent=1 // pred_fallthru
      _
    // Predicated region
    $region22: #{tpu_custom_call.1} parent=1 // pred_check
      _
    $region23: #{tpu_custom_call.1} parent=1 // pred_check_branch
      %54 = sbr.rel (0) target = $region25
    $region24: #{tpu_custom_call.1} parent=1 // pred_region
      _
    $region25: #{tpu_custom_call.1} parent=1 // pred_fallthru
      _
    // Predicated region
    $region26: #{tpu_custom_call.1} parent=1 // pred_check
      _
    $region27: #{tpu_custom_call.1} parent=1 // pred_check_branch
      %56 = sbr.rel (0) target = $region29
    $region28: #{tpu_custom_call.1} parent=1 // pred_region
      _
    $region29: #{tpu_custom_call.1} parent=1 // pred_fallthru
      _
    // Predicated region
    $region30: #{tpu_custom_call.1} parent=1 // pred_check
      _
    $region31: #{tpu_custom_call.1} parent=1 // pred_check_branch
      %58 = sbr.rel (0) target = $region33
    $region32: #{tpu_custom_call.1} parent=1 // pred_region
      _
    $region33: #{tpu_custom_call.1} parent=1 // pred_fallthru
      _
    // Predicated region
    $region34: #{tpu_custom_call.1} parent=1 // pred_check
      _
    $region35: #{tpu_custom_call.1} parent=1 // pred_check_branch
      %60 = sbr.rel (0) target = $region37
    $region36: #{tpu_custom_call.1} parent=1 // pred_region
      %61 = dma.done [#allocation4], 128
    $region37: #{tpu_custom_call.1} parent=1 // pred_fallthru
      _
    // Predicated region
    $region38: #{tpu_custom_call.1} parent=1 // pred_check
      _
    $region39: #{tpu_custom_call.1} parent=1 // pred_check_branch
      %63 = sbr.rel (0) target = $region41
    $region40: #{tpu_custom_call.1} parent=1 // pred_region
      %64 = dma.done [#allocation6], 1024
    $region41: #{tpu_custom_call.1} parent=1 // pred_fallthru
      _
    // Predicated region
    $region42: #{tpu_custom_call.1} parent=1 // pred_check
      _
    $region43: #{tpu_custom_call.1} parent=1 // pred_check_branch
      %66 = sbr.rel (0) target = $region45
    $region44: #{tpu_custom_call.1} parent=1 // pred_region
      %67 = dma.done [#allocation6], 2048
    $region45: #{tpu_custom_call.1} parent=1 // pred_fallthru
      _
    %p69 = scmp.eq.s32.totalorder 0, 0
    // Predicated region
    $region46: #{tpu_custom_call.1} parent=1 // pred_check
      %p70 = pneg %p69
    $region47: #{tpu_custom_call.1} parent=1 // pred_check_branch
      %72 = sbr.rel (%p70) target = $region49
    $region48: #{tpu_custom_call.1} parent=1 // pred_region
      %vm73 = vcmask 523264
      %74 = vst.msk [vmem:[#allocation2] sm:$0xff] %vm73, 0.0
      %75 = vst.msk [vmem:[#allocation2 + $0x8] sm:$0xff] %vm73, 0.0
      %76 = vst.msk [vmem:[#allocation2 + $0x10] sm:$0xff] %vm73, 0.0
      %77 = vst.msk [vmem:[#allocation2 + $0x18] sm:$0xff] %vm73, 0.0
    $region49: #{tpu_custom_call.1} parent=1 // pred_fallthru
      _
    %v78 = vld [vmem:[#allocation3] sm:$0xff]
    %v79 = vlaneseq
    %v80 = vand.u32 %v79, 127
    %v81 = vld [vmem:[%s1] sm:$0x3]
    %v83 = vlaneseq
    %v84 = vshrl.u32 %v83, 7
    %v85 = vsub.s32 0, %v84
    %v86 = vrot.slane %v81, %v85
    %v87 = vlaneseq
    %v88 = vshrl.u32 %v87, 7
    %v89 = vsub.s32 1, %v88
    %v90 = vrot.slane %v81, %v89
    %v93 = vld [vmem:[%s2] sm:$0x3]
    %v95 = vlaneseq
    %v96 = vshrl.u32 %v95, 7
    %v97 = vsub.s32 0, %v96
    %v98 = vrot.slane %v93, %v97
    %v99 = vlaneseq
    %v100 = vshrl.u32 %v99, 7
    %v101 = vsub.s32 1, %v100
    %v102 = vrot.slane %v93, %v101
    %v105 = vld [vmem:[%s5] sm:$0x3]
    %v107 = vlaneseq
    %v108 = vshrl.u32 %v107, 7
    %v109 = vsub.s32 0, %v108
    %v110 = vrot.slane %v105, %v109
    %v111 = vlaneseq
    %v112 = vshrl.u32 %v111, 7
    %v113 = vsub.s32 1, %v112
    %v114 = vrot.slane %v105, %v113
    %v117 = vld [vmem:[#allocation2] sm:$0xff]
    %s118 = scalar_lea.vmem [#allocation2], 8
    %v119 = vld [vmem:[%s118] sm:$0xff]
    %s120 = scalar_lea.vmem [#allocation2], 16
    %v121 = vld [vmem:[%s120] sm:$0xff]
    %s122 = scalar_lea.vmem [#allocation2], 24
    %v123 = vld [vmem:[%s122] sm:$0xff]
    %vm124 = vcmp.eq.s32.totalorder %v80, 0
    %v125 = vsel %vm124, %v78, 0.0
    %vm126 = vcmask 64512
    %v127 = vsel %vm126, %v125, 0.0
    %128 = vadd.xlane.f32.xlu0 %v127
    %v129 = vpop.xlane.xlu0 %128
    %v130 = vmul.f32 %v129, %v86
    %v131 = vmul.f32 %v129, %v90
    %v132 = vadd.f32 %v130, %v98
    %v133 = vadd.f32 %v131, %v102
    %v134 = vpack.c.bf16 %v117, %v117
    %v135 = vld [vmem:[#allocation5] sm:$0xff]
    %v136 = vld [vmem:[#allocation5 + $0x8] sm:$0xff]
    %v137 = vld [vmem:[#allocation5 + $0x10] sm:$0xff]
    %v138 = vld [vmem:[#allocation5 + $0x18] sm:$0xff]
    %v139 = vld [vmem:[#allocation5 + $0x20] sm:$0xff]
    %v140 = vld [vmem:[#allocation5 + $0x28] sm:$0xff]
    %v141 = vld [vmem:[#allocation5 + $0x30] sm:$0xff]
    %v142 = vld [vmem:[#allocation5 + $0x38] sm:$0xff]
    %v151 = vunpack.c.l.b16 %v135
    %v152 = vunpack.c.h.b16 %v135
    %v153 = vunpack.c.l.b16 %v136
    %v154 = vunpack.c.h.b16 %v136
    %v155 = vunpack.c.l.b16 %v137
    %v156 = vunpack.c.h.b16 %v137
    %v157 = vunpack.c.l.b16 %v138
    %v158 = vunpack.c.h.b16 %v138
    %v159 = vunpack.c.l.b16 %v139
    %v160 = vunpack.c.h.b16 %v139
    %v161 = vunpack.c.l.b16 %v140
    %v162 = vunpack.c.h.b16 %v140
    %v163 = vunpack.c.l.b16 %v141
    %v164 = vunpack.c.h.b16 %v141
    %v165 = vunpack.c.l.b16 %v142
    %v166 = vunpack.c.h.b16 %v142
    %v167 = vpack.c.b16 %v153, %v151
    %v168 = vpack.c.b16 %v154, %v152
    %v169 = vpack.c.b16 %v157, %v155
    %v170 = vpack.c.b16 %v158, %v156
    %v171 = vpack.c.b16 %v161, %v159
    %v172 = vpack.c.b16 %v162, %v160
    %v173 = vpack.c.b16 %v165, %v163
    %v174 = vpack.c.b16 %v166, %v164
    %vm183 = vcmask 523264
    %v185 = vsel %vm183, %v134, 0
    %187 = vmatprep.subr.bf16.mxu0 %v168
    %188 = vmatpush1.bf16.msra.mxu0 %v167
    %189 = vmatprep.subr.bf16.mxu0 %v170
    %190 = vmatpush1.bf16.msra.mxu0 %v169
    %191 = vmatprep.subr.bf16.mxu0 %v172
    %192 = vmatpush1.bf16.msra.mxu0 %v171
    %193 = vmatprep.subr.bf16.mxu0 %v174
    %194 = vmatpush1.bf16.msra.mxu0 %v173
    %195 = vmatprep.subr.bf16.mxu0 0
    %196 = vmatpush1.bf16.msra.mxu0 0
    %197 = vmatprep.subr.bf16.mxu0 0
    %198 = vmatpush1.bf16.msra.mxu0 0
    %199 = vmatprep.subr.bf16.mxu0 0
    %200 = vmatpush1.bf16.msra.mxu0 0
    %201 = vmatprep.subr.bf16.mxu0 0
    %202 = vmatpush1.bf16.msra.mxu0 0
    %203 = vmatprep.subr.bf16.mxu0 0
    %204 = vmatpush1.bf16.msra.mxu0 0
    %205 = vmatprep.subr.bf16.mxu0 0
    %206 = vmatpush1.bf16.msra.mxu0 0
    %207 = vmatprep.subr.bf16.mxu0 0
    %208 = vmatpush1.bf16.msra.mxu0 0
    %209 = vmatprep.subr.bf16.mxu0 0
    %210 = vmatpush1.bf16.msra.mxu0 0
    %211 = vmatprep.subr.bf16.mxu0 0
    %212 = vmatpush1.bf16.msra.mxu0 0
    %213 = vmatprep.subr.bf16.mxu0 0
    %214 = vmatpush1.bf16.msra.mxu0 0
    %215 = vmatprep.subr.bf16.mxu0 0
    %216 = vmatpush1.bf16.msra.mxu0 0
    %217 = vmatprep.subr.bf16.mxu0 0
    %218 = vmatpush1.bf16.msra.mxu0 0
    %219 = vmatprep.mubr.bf16.mxu0 0
    %220 = vmatmul.mubr.bf16.gmra.mrb[0].mxu0 %v185
    %v221 = vpop.f32.mrb[0].mxu0
    %v222 = vadd.f32 0.0, %v221
    %v223 = vpop.f32.mrb[0].mxu0
    %v224 = vadd.f32 0.0, %v223
    %v225 = vpop.f32.mrb[0].mxu0
    %v226 = vpop.f32.mrb[0].mxu0
    %227 = vdwg.mxu0
    %v228 = vadd.f32 %v132, %v222
    %v229 = vadd.f32 %v133, %v224
    %v230 = vmul.f32 %v228, 0.5
    %v231 = vtanh.pop %v230
    %v232 = vmul.f32 %v231, 0.5
    %v233 = vadd.f32 %v232, 0.5
    %v234 = vtanh.pop %v229
    %v235 = vmul.f32 %v229, 0.5
    %v236 = vtanh.pop %v235
    %v237 = vmul.f32 %v236, 0.5
    %v238 = vadd.f32 %v237, 0.5
    %240 = vrot.lane.b32.xlu0 %v119, 64
    %v241 = vpop.permute.xlu0 %240
    %v243 = vmul.f32 %v233, %v241
    %v244 = vmul.f32 %v233, %v234
    %246 = vrot.lane.b32.xlu0 %v244, 64
    %v247 = vpop.permute.xlu0 %246
    %v249 = vadd.f32 %v243, %v247
    %v250 = vtanh.pop %v249
    %v251 = vmul.f32 %v238, %v250
    %253 = vrot.lane.b32.xlu0 %v251, 64
    %v254 = vpop.permute.xlu0 %253
    %257 = vrot.lane.b32.xlu0 %v121, 64
    %v258 = vpop.permute.xlu0 %257
    %v260 = vsel %vm183, %v254, %v258
    %v261 = vpack.c.bf16 %v260, %v260
    %v262 = vld [vmem:[#allocation7] sm:$0xff]
    %v263 = vld [vmem:[#allocation7 + $0x8] sm:$0xff]
    %v264 = vld [vmem:[#allocation7 + $0x10] sm:$0xff]
    %v265 = vld [vmem:[#allocation7 + $0x18] sm:$0xff]
    %v266 = vld [vmem:[#allocation7 + $0x20] sm:$0xff]
    %v267 = vld [vmem:[#allocation7 + $0x28] sm:$0xff]
    %v268 = vld [vmem:[#allocation7 + $0x30] sm:$0xff]
    %v269 = vld [vmem:[#allocation7 + $0x38] sm:$0xff]
    %v270 = vld [vmem:[#allocation7 + $0x40] sm:$0xff]
    %v271 = vld [vmem:[#allocation7 + $0x48] sm:$0xff]
    %v272 = vld [vmem:[#allocation7 + $0x50] sm:$0xff]
    %v273 = vld [vmem:[#allocation7 + $0x58] sm:$0xff]
    %v274 = vld [vmem:[#allocation7 + $0x60] sm:$0xff]
    %v275 = vld [vmem:[#allocation7 + $0x68] sm:$0xff]
    %v276 = vld [vmem:[#allocation7 + $0x70] sm:$0xff]
    %v277 = vld [vmem:[#allocation7 + $0x78] sm:$0xff]
    %v294 = vunpack.c.l.b16 %v262
    %v295 = vunpack.c.h.b16 %v262
    %v296 = vunpack.c.l.b16 %v263
    %v297 = vunpack.c.h.b16 %v263
    %v298 = vunpack.c.l.b16 %v264
    %v299 = vunpack.c.h.b16 %v264
    %v300 = vunpack.c.l.b16 %v265
    %v301 = vunpack.c.h.b16 %v265
    %v302 = vunpack.c.l.b16 %v266
    %v303 = vunpack.c.h.b16 %v266
    %v304 = vunpack.c.l.b16 %v267
    %v305 = vunpack.c.h.b16 %v267
    %v306 = vunpack.c.l.b16 %v268
    %v307 = vunpack.c.h.b16 %v268
    %v308 = vunpack.c.l.b16 %v269
    %v309 = vunpack.c.h.b16 %v269
    %v310 = vunpack.c.l.b16 %v270
    %v311 = vunpack.c.h.b16 %v270
    %v312 = vunpack.c.l.b16 %v271
    %v313 = vunpack.c.h.b16 %v271
    %v314 = vunpack.c.l.b16 %v272
    %v315 = vunpack.c.h.b16 %v272
    %v316 = vunpack.c.l.b16 %v273
    %v317 = vunpack.c.h.b16 %v273
    %v318 = vunpack.c.l.b16 %v274
    %v319 = vunpack.c.h.b16 %v274
    %v320 = vunpack.c.l.b16 %v275
    %v321 = vunpack.c.h.b16 %v275
    %v322 = vunpack.c.l.b16 %v276
    %v323 = vunpack.c.h.b16 %v276
    %v324 = vunpack.c.l.b16 %v277
    %v325 = vunpack.c.h.b16 %v277
    %v326 = vpack.c.b16 %v296, %v294
    %v327 = vpack.c.b16 %v297, %v295
    %v328 = vpack.c.b16 %v300, %v298
    %v329 = vpack.c.b16 %v301, %v299
    %v330 = vpack.c.b16 %v304, %v302
    %v331 = vpack.c.b16 %v305, %v303
    %v332 = vpack.c.b16 %v308, %v306
    %v333 = vpack.c.b16 %v309, %v307
    %v334 = vpack.c.b16 %v312, %v310
    %v335 = vpack.c.b16 %v313, %v311
    %v336 = vpack.c.b16 %v316, %v314
    %v337 = vpack.c.b16 %v317, %v315
    %v338 = vpack.c.b16 %v320, %v318
    %v339 = vpack.c.b16 %v321, %v319
    %v340 = vpack.c.b16 %v324, %v322
    %v341 = vpack.c.b16 %v325, %v323
    %358 = vmatprep.subr.bf16.mxu0 %v327
    %359 = vmatpush1.bf16.msra.mxu0 %v326
    %360 = vmatprep.subr.bf16.mxu0 %v329
    %361 = vmatpush1.bf16.msra.mxu0 %v328
    %362 = vmatprep.subr.bf16.mxu0 %v331
    %363 = vmatpush1.bf16.msra.mxu0 %v330
    %364 = vmatprep.subr.bf16.mxu0 %v333
    %365 = vmatpush1.bf16.msra.mxu0 %v332
    %366 = vmatprep.subr.bf16.mxu0 %v335
    %367 = vmatpush1.bf16.msra.mxu0 %v334
    %368 = vmatprep.subr.bf16.mxu0 %v337
    %369 = vmatpush1.bf16.msra.mxu0 %v336
    %370 = vmatprep.subr.bf16.mxu0 %v339
    %371 = vmatpush1.bf16.msra.mxu0 %v338
    %372 = vmatprep.subr.bf16.mxu0 %v341
    %373 = vmatpush1.bf16.msra.mxu0 %v340
    %374 = vmatprep.subr.bf16.mxu0 0
    %375 = vmatpush1.bf16.msra.mxu0 0
    %376 = vmatprep.subr.bf16.mxu0 0
    %377 = vmatpush1.bf16.msra.mxu0 0
    %378 = vmatprep.subr.bf16.mxu0 0
    %379 = vmatpush1.bf16.msra.mxu0 0
    %380 = vmatprep.subr.bf16.mxu0 0
    %381 = vmatpush1.bf16.msra.mxu0 0
    %382 = vmatprep.subr.bf16.mxu0 0
    %383 = vmatpush1.bf16.msra.mxu0 0
    %384 = vmatprep.subr.bf16.mxu0 0
    %385 = vmatpush1.bf16.msra.mxu0 0
    %386 = vmatprep.subr.bf16.mxu0 0
    %387 = vmatpush1.bf16.msra.mxu0 0
    %388 = vmatprep.subr.bf16.mxu0 0
    %389 = vmatpush1.bf16.msra.mxu0 0
    %390 = vmatprep.mubr.bf16.mxu0 0
    %391 = vmatmul.mubr.bf16.gmra.mrb[0].mxu0 %v261
    %v392 = vpop.f32.mrb[0].mxu0
    %v393 = vadd.f32 %v110, %v392
    %v394 = vpop.f32.mrb[0].mxu0
    %v395 = vadd.f32 %v114, %v394
    %v396 = vpop.f32.mrb[0].mxu0
    %v397 = vpop.f32.mrb[0].mxu0
    %398 = vdwg.mxu0
    %v399 = vmul.f32 %v393, 0.5
    %v400 = vtanh.pop %v399
    %v401 = vmul.f32 %v400, 0.5
    %v402 = vadd.f32 %v401, 0.5
    %v403 = vtanh.pop %v395
    %v404 = vmul.f32 %v395, 0.5
    %v405 = vtanh.pop %v404
    %v406 = vmul.f32 %v405, 0.5
    %v407 = vadd.f32 %v406, 0.5
    %409 = vrot.lane.b32.xlu0 %v123, 64
    %v410 = vpop.permute.xlu0 %409
    %v412 = vmul.f32 %v402, %v410
    %v413 = vmul.f32 %v402, %v403
    %415 = vrot.lane.b32.xlu0 %v413, 64
    %v416 = vpop.permute.xlu0 %415
    %v418 = vadd.f32 %v412, %v416
    %v419 = vtanh.pop %v418
    %v420 = vmul.f32 %v407, %v419
    %vm421 = vcmp.eq.s32.totalorder %v80, 1
    %v422 = vsel %vm421, %v78, 0.0
    %v423 = vsel %vm126, %v422, 0.0
    %424 = vadd.xlane.f32.xlu0 %v423
    %v425 = vpop.xlane.xlu0 %424
    %v426 = vmul.f32 %v425, %v86
    %v427 = vmul.f32 %v425, %v90
    %v428 = vadd.f32 %v426, %v98
    %v429 = vadd.f32 %v427, %v102
    %v430 = vpack.c.bf16 %v251, %v251
    %432 = vrot.lane.b32.xlu0 %v430, 64
    %v433 = vpop.permute.xlu0 %432
    %v435 = vsel %vm183, %v433, 0
    %437 = vmatprep.subr.bf16.mxu0 %v168
    %438 = vmatpush1.bf16.msra.mxu0 %v167
    %439 = vmatprep.subr.bf16.mxu0 %v170
    %440 = vmatpush1.bf16.msra.mxu0 %v169
    %441 = vmatprep.subr.bf16.mxu0 %v172
    %442 = vmatpush1.bf16.msra.mxu0 %v171
    %443 = vmatprep.subr.bf16.mxu0 %v174
    %444 = vmatpush1.bf16.msra.mxu0 %v173
    %445 = vmatprep.subr.bf16.mxu0 0
    %446 = vmatpush1.bf16.msra.mxu0 0
    %447 = vmatprep.subr.bf16.mxu0 0
    %448 = vmatpush1.bf16.msra.mxu0 0
    %449 = vmatprep.subr.bf16.mxu0 0
    %450 = vmatpush1.bf16.msra.mxu0 0
    %451 = vmatprep.subr.bf16.mxu0 0
    %452 = vmatpush1.bf16.msra.mxu0 0
    %453 = vmatprep.subr.bf16.mxu0 0
    %454 = vmatpush1.bf16.msra.mxu0 0
    %455 = vmatprep.subr.bf16.mxu0 0
    %456 = vmatpush1.bf16.msra.mxu0 0
    %457 = vmatprep.subr.bf16.mxu0 0
    %458 = vmatpush1.bf16.msra.mxu0 0
    %459 = vmatprep.subr.bf16.mxu0 0
    %460 = vmatpush1.bf16.msra.mxu0 0
    %461 = vmatprep.subr.bf16.mxu0 0
    %462 = vmatpush1.bf16.msra.mxu0 0
    %463 = vmatprep.subr.bf16.mxu0 0
    %464 = vmatpush1.bf16.msra.mxu0 0
    %465 = vmatprep.subr.bf16.mxu0 0
    %466 = vmatpush1.bf16.msra.mxu0 0
    %467 = vmatprep.subr.bf16.mxu0 0
    %468 = vmatpush1.bf16.msra.mxu0 0
    %469 = vmatprep.mubr.bf16.mxu0 0
    %470 = vmatmul.mubr.bf16.gmra.mrb[0].mxu0 %v435
    %v471 = vpop.f32.mrb[0].mxu0
    %v472 = vadd.f32 0.0, %v471
    %v473 = vpop.f32.mrb[0].mxu0
    %v474 = vadd.f32 0.0, %v473
    %v475 = vpop.f32.mrb[0].mxu0
    %v476 = vpop.f32.mrb[0].mxu0
    %477 = vdwg.mxu0
    %v478 = vadd.f32 %v428, %v472
    %v479 = vadd.f32 %v429, %v474
    %v480 = vmul.f32 %v478, 0.5
    %v481 = vtanh.pop %v480
    %v482 = vmul.f32 %v481, 0.5
    %v483 = vadd.f32 %v482, 0.5
    %v484 = vtanh.pop %v479
    %v485 = vmul.f32 %v479, 0.5
    %v486 = vtanh.pop %v485
    %v487 = vmul.f32 %v486, 0.5
    %v488 = vadd.f32 %v487, 0.5
    %v489 = vmul.f32 %v483, %v249
    %v490 = vmul.f32 %v483, %v484
    %492 = vrot.lane.b32.xlu0 %v490, 64
    %v493 = vpop.permute.xlu0 %492
    %v495 = vadd.f32 %v489, %v493
    %v496 = vtanh.pop %v495
    %v497 = vmul.f32 %v488, %v496
    %499 = vrot.lane.b32.xlu0 %v497, 64
    %v500 = vpop.permute.xlu0 %499
    %v502 = vsel %vm183, %v500, %v420
    %v503 = vpack.c.bf16 %v502, %v502
    %504 = vmatprep.subr.bf16.mxu0 %v327
    %505 = vmatpush1.bf16.msra.mxu0 %v326
    %506 = vmatprep.subr.bf16.mxu0 %v329
    %507 = vmatpush1.bf16.msra.mxu0 %v328
    %508 = vmatprep.subr.bf16.mxu0 %v331
    %509 = vmatpush1.bf16.msra.mxu0 %v330
    %510 = vmatprep.subr.bf16.mxu0 %v333
    %511 = vmatpush1.bf16.msra.mxu0 %v332
    %512 = vmatprep.subr.bf16.mxu0 %v335
    %513 = vmatpush1.bf16.msra.mxu0 %v334
    %514 = vmatprep.subr.bf16.mxu0 %v337
    %515 = vmatpush1.bf16.msra.mxu0 %v336
    %516 = vmatprep.subr.bf16.mxu0 %v339
    %517 = vmatpush1.bf16.msra.mxu0 %v338
    %518 = vmatprep.subr.bf16.mxu0 %v341
    %519 = vmatpush1.bf16.msra.mxu0 %v340
    %520 = vmatprep.subr.bf16.mxu0 0
    %521 = vmatpush1.bf16.msra.mxu0 0
    %522 = vmatprep.subr.bf16.mxu0 0
    %523 = vmatpush1.bf16.msra.mxu0 0
    %524 = vmatprep.subr.bf16.mxu0 0
    %525 = vmatpush1.bf16.msra.mxu0 0
    %526 = vmatprep.subr.bf16.mxu0 0
    %527 = vmatpush1.bf16.msra.mxu0 0
    %528 = vmatprep.subr.bf16.mxu0 0
    %529 = vmatpush1.bf16.msra.mxu0 0
    %530 = vmatprep.subr.bf16.mxu0 0
    %531 = vmatpush1.bf16.msra.mxu0 0
    %532 = vmatprep.subr.bf16.mxu0 0
    %533 = vmatpush1.bf16.msra.mxu0 0
    %534 = vmatprep.subr.bf16.mxu0 0
    %535 = vmatpush1.bf16.msra.mxu0 0
    %536 = vmatprep.mubr.bf16.mxu0 0
    %537 = vmatmul.mubr.bf16.gmra.mrb[0].mxu0 %v503
    %v538 = vpop.f32.mrb[0].mxu0
    %v539 = vadd.f32 %v110, %v538
    %v540 = vpop.f32.mrb[0].mxu0
    %v541 = vadd.f32 %v114, %v540
    %v542 = vpop.f32.mrb[0].mxu0
    %v543 = vpop.f32.mrb[0].mxu0
    %544 = vdwg.mxu0
    %v545 = vmul.f32 %v539, 0.5
    %v546 = vtanh.pop %v545
    %v547 = vmul.f32 %v546, 0.5
    %v548 = vadd.f32 %v547, 0.5
    %v549 = vtanh.pop %v541
    %v550 = vmul.f32 %v541, 0.5
    %v551 = vtanh.pop %v550
    %v552 = vmul.f32 %v551, 0.5
    %v553 = vadd.f32 %v552, 0.5
    %v554 = vmul.f32 %v548, %v418
    %v555 = vmul.f32 %v548, %v549
    %557 = vrot.lane.b32.xlu0 %v555, 64
    %v558 = vpop.permute.xlu0 %557
    %v560 = vadd.f32 %v554, %v558
    %v561 = vtanh.pop %v560
    %v562 = vmul.f32 %v553, %v561
    %vm563 = vcmp.eq.s32.totalorder %v80, 2
    %v564 = vsel %vm563, %v78, 0.0
    %v565 = vsel %vm126, %v564, 0.0
    %566 = vadd.xlane.f32.xlu0 %v565
    %v567 = vpop.xlane.xlu0 %566
    %v568 = vmul.f32 %v567, %v86
    %v569 = vmul.f32 %v567, %v90
    %v570 = vadd.f32 %v568, %v98
    %v571 = vadd.f32 %v569, %v102
    %v572 = vpack.c.bf16 %v497, %v497
    %574 = vrot.lane.b32.xlu0 %v572, 64
    %v575 = vpop.permute.xlu0 %574
    %v577 = vsel %vm183, %v575, 0
    %579 = vmatprep.subr.bf16.mxu0 %v168
    %580 = vmatpush1.bf16.msra.mxu0 %v167
    %581 = vmatprep.subr.bf16.mxu0 %v170
    %582 = vmatpush1.bf16.msra.mxu0 %v169
    %583 = vmatprep.subr.bf16.mxu0 %v172
    %584 = vmatpush1.bf16.msra.mxu0 %v171
    %585 = vmatprep.subr.bf16.mxu0 %v174
    %586 = vmatpush1.bf16.msra.mxu0 %v173
    %587 = vmatprep.subr.bf16.mxu0 0
    %588 = vmatpush1.bf16.msra.mxu0 0
    %589 = vmatprep.subr.bf16.mxu0 0
    %590 = vmatpush1.bf16.msra.mxu0 0
    %591 = vmatprep.subr.bf16.mxu0 0
    %592 = vmatpush1.bf16.msra.mxu0 0
    %593 = vmatprep.subr.bf16.mxu0 0
    %594 = vmatpush1.bf16.msra.mxu0 0
    %595 = vmatprep.subr.bf16.mxu0 0
    %596 = vmatpush1.bf16.msra.mxu0 0
    %597 = vmatprep.subr.bf16.mxu0 0
    %598 = vmatpush1.bf16.msra.mxu0 0
    %599 = vmatprep.subr.bf16.mxu0 0
    %600 = vmatpush1.bf16.msra.mxu0 0
    %601 = vmatprep.subr.bf16.mxu0 0
    %602 = vmatpush1.bf16.msra.mxu0 0
    %603 = vmatprep.subr.bf16.mxu0 0
    %604 = vmatpush1.bf16.msra.mxu0 0
    %605 = vmatprep.subr.bf16.mxu0 0
    %606 = vmatpush1.bf16.msra.mxu0 0
    %607 = vmatprep.subr.bf16.mxu0 0
    %608 = vmatpush1.bf16.msra.mxu0 0
    %609 = vmatprep.subr.bf16.mxu0 0
    %610 = vmatpush1.bf16.msra.mxu0 0
    %611 = vmatprep.mubr.bf16.mxu0 0
    %612 = vmatmul.mubr.bf16.gmra.mrb[0].mxu0 %v577
    %v613 = vpop.f32.mrb[0].mxu0
    %v614 = vadd.f32 0.0, %v613
    %v615 = vpop.f32.mrb[0].mxu0
    %v616 = vadd.f32 0.0, %v615
    %v617 = vpop.f32.mrb[0].mxu0
    %v618 = vpop.f32.mrb[0].mxu0
    %619 = vdwg.mxu0
    %v620 = vadd.f32 %v570, %v614
    %v621 = vadd.f32 %v571, %v616
    %v622 = vmul.f32 %v620, 0.5
    %v623 = vtanh.pop %v622
    %v624 = vmul.f32 %v623, 0.5
    %v625 = vadd.f32 %v624, 0.5
    %v626 = vtanh.pop %v621
    %v627 = vmul.f32 %v621, 0.5
    %v628 = vtanh.pop %v627
    %v629 = vmul.f32 %v628, 0.5
    %v630 = vadd.f32 %v629, 0.5
    %v631 = vmul.f32 %v625, %v495
    %v632 = vmul.f32 %v625, %v626
    %634 = vrot.lane.b32.xlu0 %v632, 64
    %v635 = vpop.permute.xlu0 %634
    %v637 = vadd.f32 %v631, %v635
    %v638 = vtanh.pop %v637
    %v639 = vmul.f32 %v630, %v638
    %641 = vrot.lane.b32.xlu0 %v639, 64
    %v642 = vpop.permute.xlu0 %641
    %v644 = vsel %vm183, %v642, %v562
    %v645 = vpack.c.bf16 %v644, %v644
    %646 = vmatprep.subr.bf16.mxu0 %v327
    %647 = vmatpush1.bf16.msra.mxu0 %v326
    %648 = vmatprep.subr.bf16.mxu0 %v329
    %649 = vmatpush1.bf16.msra.mxu0 %v328
    %650 = vmatprep.subr.bf16.mxu0 %v331
    %651 = vmatpush1.bf16.msra.mxu0 %v330
    %652 = vmatprep.subr.bf16.mxu0 %v333
    %653 = vmatpush1.bf16.msra.mxu0 %v332
    %654 = vmatprep.subr.bf16.mxu0 %v335
    %655 = vmatpush1.bf16.msra.mxu0 %v334
    %656 = vmatprep.subr.bf16.mxu0 %v337
    %657 = vmatpush1.bf16.msra.mxu0 %v336
    %658 = vmatprep.subr.bf16.mxu0 %v339
    %659 = vmatpush1.bf16.msra.mxu0 %v338
    %660 = vmatprep.subr.bf16.mxu0 %v341
    %661 = vmatpush1.bf16.msra.mxu0 %v340
    %662 = vmatprep.subr.bf16.mxu0 0
    %663 = vmatpush1.bf16.msra.mxu0 0
    %664 = vmatprep.subr.bf16.mxu0 0
    %665 = vmatpush1.bf16.msra.mxu0 0
    %666 = vmatprep.subr.bf16.mxu0 0
    %667 = vmatpush1.bf16.msra.mxu0 0
    %668 = vmatprep.subr.bf16.mxu0 0
    %669 = vmatpush1.bf16.msra.mxu0 0
    %670 = vmatprep.subr.bf16.mxu0 0
    %671 = vmatpush1.bf16.msra.mxu0 0
    %672 = vmatprep.subr.bf16.mxu0 0
    %673 = vmatpush1.bf16.msra.mxu0 0
    %674 = vmatprep.subr.bf16.mxu0 0
    %675 = vmatpush1.bf16.msra.mxu0 0
    %676 = vmatprep.subr.bf16.mxu0 0
    %677 = vmatpush1.bf16.msra.mxu0 0
    %678 = vmatprep.mubr.bf16.mxu0 0
    %679 = vmatmul.mubr.bf16.gmra.mrb[0].mxu0 %v645
    %v680 = vpop.f32.mrb[0].mxu0
    %v681 = vadd.f32 %v110, %v680
    %v682 = vpop.f32.mrb[0].mxu0
    %v683 = vadd.f32 %v114, %v682
    %v684 = vpop.f32.mrb[0].mxu0
    %v685 = vpop.f32.mrb[0].mxu0
    %686 = vdwg.mxu0
    %v687 = vmul.f32 %v681, 0.5
    %v688 = vtanh.pop %v687
    %v689 = vmul.f32 %v688, 0.5
    %v690 = vadd.f32 %v689, 0.5
    %v691 = vtanh.pop %v683
    %v692 = vmul.f32 %v683, 0.5
    %v693 = vtanh.pop %v692
    %v694 = vmul.f32 %v693, 0.5
    %v695 = vadd.f32 %v694, 0.5
    %v696 = vmul.f32 %v690, %v560
    %v697 = vmul.f32 %v690, %v691
    %699 = vrot.lane.b32.xlu0 %v697, 64
    %v700 = vpop.permute.xlu0 %699
    %v702 = vadd.f32 %v696, %v700
    %v703 = vtanh.pop %v702
    %v704 = vmul.f32 %v695, %v703
    %vm705 = vcmp.eq.s32.totalorder %v80, 3
    %v706 = vsel %vm705, %v78, 0.0
    %v707 = vsel %vm126, %v706, 0.0
    %708 = vadd.xlane.f32.xlu0 %v707
    %v709 = vpop.xlane.xlu0 %708
    %v710 = vmul.f32 %v709, %v86
    %v711 = vmul.f32 %v709, %v90
    %v712 = vadd.f32 %v710, %v98
    %v713 = vadd.f32 %v711, %v102
    %v714 = vpack.c.bf16 %v639, %v639
    %716 = vrot.lane.b32.xlu0 %v714, 64
    %v717 = vpop.permute.xlu0 %716
    %v719 = vsel %vm183, %v717, 0
    %721 = vmatprep.subr.bf16.mxu0 %v168
    %722 = vmatpush1.bf16.msra.mxu0 %v167
    %723 = vmatprep.subr.bf16.mxu0 %v170
    %724 = vmatpush1.bf16.msra.mxu0 %v169
    %725 = vmatprep.subr.bf16.mxu0 %v172
    %726 = vmatpush1.bf16.msra.mxu0 %v171
    %727 = vmatprep.subr.bf16.mxu0 %v174
    %728 = vmatpush1.bf16.msra.mxu0 %v173
    %729 = vmatprep.subr.bf16.mxu0 0
    %730 = vmatpush1.bf16.msra.mxu0 0
    %731 = vmatprep.subr.bf16.mxu0 0
    %732 = vmatpush1.bf16.msra.mxu0 0
    %733 = vmatprep.subr.bf16.mxu0 0
    %734 = vmatpush1.bf16.msra.mxu0 0
    %735 = vmatprep.subr.bf16.mxu0 0
    %736 = vmatpush1.bf16.msra.mxu0 0
    %737 = vmatprep.subr.bf16.mxu0 0
    %738 = vmatpush1.bf16.msra.mxu0 0
    %739 = vmatprep.subr.bf16.mxu0 0
    %740 = vmatpush1.bf16.msra.mxu0 0
    %741 = vmatprep.subr.bf16.mxu0 0
    %742 = vmatpush1.bf16.msra.mxu0 0
    %743 = vmatprep.subr.bf16.mxu0 0
    %744 = vmatpush1.bf16.msra.mxu0 0
    %745 = vmatprep.subr.bf16.mxu0 0
    %746 = vmatpush1.bf16.msra.mxu0 0
    %747 = vmatprep.subr.bf16.mxu0 0
    %748 = vmatpush1.bf16.msra.mxu0 0
    %749 = vmatprep.subr.bf16.mxu0 0
    %750 = vmatpush1.bf16.msra.mxu0 0
    %751 = vmatprep.subr.bf16.mxu0 0
    %752 = vmatpush1.bf16.msra.mxu0 0
    %753 = vmatprep.mubr.bf16.mxu0 0
    %754 = vmatmul.mubr.bf16.gmra.mrb[0].mxu0 %v719
    %v755 = vpop.f32.mrb[0].mxu0
    %v756 = vadd.f32 0.0, %v755
    %v757 = vpop.f32.mrb[0].mxu0
    %v758 = vadd.f32 0.0, %v757
    %v759 = vpop.f32.mrb[0].mxu0
    %v760 = vpop.f32.mrb[0].mxu0
    %761 = vdwg.mxu0
    %v762 = vadd.f32 %v712, %v756
    %v763 = vadd.f32 %v713, %v758
    %v764 = vmul.f32 %v762, 0.5
    %v765 = vtanh.pop %v764
    %v766 = vmul.f32 %v765, 0.5
    %v767 = vadd.f32 %v766, 0.5
    %v768 = vtanh.pop %v763
    %v769 = vmul.f32 %v763, 0.5
    %v770 = vtanh.pop %v769
    %v771 = vmul.f32 %v770, 0.5
    %v772 = vadd.f32 %v771, 0.5
    %v773 = vmul.f32 %v767, %v637
    %v774 = vmul.f32 %v767, %v768
    %776 = vrot.lane.b32.xlu0 %v774, 64
    %v777 = vpop.permute.xlu0 %776
    %v779 = vadd.f32 %v773, %v777
    %v780 = vtanh.pop %v779
    %v781 = vmul.f32 %v772, %v780
    %783 = vrot.lane.b32.xlu0 %v781, 64
    %v784 = vpop.permute.xlu0 %783
    %v786 = vsel %vm183, %v784, %v704
    %v787 = vpack.c.bf16 %v786, %v786
    %788 = vmatprep.subr.bf16.mxu0 %v327
    %789 = vmatpush1.bf16.msra.mxu0 %v326
    %790 = vmatprep.subr.bf16.mxu0 %v329
    %791 = vmatpush1.bf16.msra.mxu0 %v328
    %792 = vmatprep.subr.bf16.mxu0 %v331
    %793 = vmatpush1.bf16.msra.mxu0 %v330
    %794 = vmatprep.subr.bf16.mxu0 %v333
    %795 = vmatpush1.bf16.msra.mxu0 %v332
    %796 = vmatprep.subr.bf16.mxu0 %v335
    %797 = vmatpush1.bf16.msra.mxu0 %v334
    %798 = vmatprep.subr.bf16.mxu0 %v337
    %799 = vmatpush1.bf16.msra.mxu0 %v336
    %800 = vmatprep.subr.bf16.mxu0 %v339
    %801 = vmatpush1.bf16.msra.mxu0 %v338
    %802 = vmatprep.subr.bf16.mxu0 %v341
    %803 = vmatpush1.bf16.msra.mxu0 %v340
    %804 = vmatprep.subr.bf16.mxu0 0
    %805 = vmatpush1.bf16.msra.mxu0 0
    %806 = vmatprep.subr.bf16.mxu0 0
    %807 = vmatpush1.bf16.msra.mxu0 0
    %808 = vmatprep.subr.bf16.mxu0 0
    %809 = vmatpush1.bf16.msra.mxu0 0
    %810 = vmatprep.subr.bf16.mxu0 0
    %811 = vmatpush1.bf16.msra.mxu0 0
    %812 = vmatprep.subr.bf16.mxu0 0
    %813 = vmatpush1.bf16.msra.mxu0 0
    %814 = vmatprep.subr.bf16.mxu0 0
    %815 = vmatpush1.bf16.msra.mxu0 0
    %816 = vmatprep.subr.bf16.mxu0 0
    %817 = vmatpush1.bf16.msra.mxu0 0
    %818 = vmatprep.subr.bf16.mxu0 0
    %819 = vmatpush1.bf16.msra.mxu0 0
    %820 = vmatprep.mubr.bf16.mxu0 0
    %821 = vmatmul.mubr.bf16.gmra.mrb[0].mxu0 %v787
    %v822 = vpop.f32.mrb[0].mxu0
    %v823 = vadd.f32 %v110, %v822
    %v824 = vpop.f32.mrb[0].mxu0
    %v825 = vadd.f32 %v114, %v824
    %v826 = vpop.f32.mrb[0].mxu0
    %v827 = vpop.f32.mrb[0].mxu0
    %828 = vdwg.mxu0
    %v829 = vmul.f32 %v823, 0.5
    %v830 = vtanh.pop %v829
    %v831 = vmul.f32 %v830, 0.5
    %v832 = vadd.f32 %v831, 0.5
    %v833 = vtanh.pop %v825
    %v834 = vmul.f32 %v825, 0.5
    %v835 = vtanh.pop %v834
    %v836 = vmul.f32 %v835, 0.5
    %v837 = vadd.f32 %v836, 0.5
    %v838 = vmul.f32 %v832, %v702
    %v839 = vmul.f32 %v832, %v833
    %841 = vrot.lane.b32.xlu0 %v839, 64
    %v842 = vpop.permute.xlu0 %841
    %v844 = vadd.f32 %v838, %v842
    %v845 = vtanh.pop %v844
    %v846 = vmul.f32 %v837, %v845
    %vm847 = vcmp.eq.s32.totalorder %v80, 4
    %v848 = vsel %vm847, %v78, 0.0
    %v849 = vsel %vm126, %v848, 0.0
    %850 = vadd.xlane.f32.xlu0 %v849
    %v851 = vpop.xlane.xlu0 %850
    %v852 = vmul.f32 %v851, %v86
    %v853 = vmul.f32 %v851, %v90
    %v854 = vadd.f32 %v852, %v98
    %v855 = vadd.f32 %v853, %v102
    %v856 = vpack.c.bf16 %v781, %v781
    %858 = vrot.lane.b32.xlu0 %v856, 64
    %v859 = vpop.permute.xlu0 %858
    %v861 = vsel %vm183, %v859, 0
    %863 = vmatprep.subr.bf16.mxu0 %v168
    %864 = vmatpush1.bf16.msra.mxu0 %v167
    %865 = vmatprep.subr.bf16.mxu0 %v170
    %866 = vmatpush1.bf16.msra.mxu0 %v169
    %867 = vmatprep.subr.bf16.mxu0 %v172
    %868 = vmatpush1.bf16.msra.mxu0 %v171
    %869 = vmatprep.subr.bf16.mxu0 %v174
    %870 = vmatpush1.bf16.msra.mxu0 %v173
    %871 = vmatprep.subr.bf16.mxu0 0
    %872 = vmatpush1.bf16.msra.mxu0 0
    %873 = vmatprep.subr.bf16.mxu0 0
    %874 = vmatpush1.bf16.msra.mxu0 0
    %875 = vmatprep.subr.bf16.mxu0 0
    %876 = vmatpush1.bf16.msra.mxu0 0
    %877 = vmatprep.subr.bf16.mxu0 0
    %878 = vmatpush1.bf16.msra.mxu0 0
    %879 = vmatprep.subr.bf16.mxu0 0
    %880 = vmatpush1.bf16.msra.mxu0 0
    %881 = vmatprep.subr.bf16.mxu0 0
    %882 = vmatpush1.bf16.msra.mxu0 0
    %883 = vmatprep.subr.bf16.mxu0 0
    %884 = vmatpush1.bf16.msra.mxu0 0
    %885 = vmatprep.subr.bf16.mxu0 0
    %886 = vmatpush1.bf16.msra.mxu0 0
    %887 = vmatprep.subr.bf16.mxu0 0
    %888 = vmatpush1.bf16.msra.mxu0 0
    %889 = vmatprep.subr.bf16.mxu0 0
    %890 = vmatpush1.bf16.msra.mxu0 0
    %891 = vmatprep.subr.bf16.mxu0 0
    %892 = vmatpush1.bf16.msra.mxu0 0
    %893 = vmatprep.subr.bf16.mxu0 0
    %894 = vmatpush1.bf16.msra.mxu0 0
    %895 = vmatprep.mubr.bf16.mxu0 0
    %896 = vmatmul.mubr.bf16.gmra.mrb[0].mxu0 %v861
    %v897 = vpop.f32.mrb[0].mxu0
    %v898 = vadd.f32 0.0, %v897
    %v899 = vpop.f32.mrb[0].mxu0
    %v900 = vadd.f32 0.0, %v899
    %v901 = vpop.f32.mrb[0].mxu0
    %v902 = vpop.f32.mrb[0].mxu0
    %903 = vdwg.mxu0
    %v904 = vadd.f32 %v854, %v898
    %v905 = vadd.f32 %v855, %v900
    %v906 = vmul.f32 %v904, 0.5
    %v907 = vtanh.pop %v906
    %v908 = vmul.f32 %v907, 0.5
    %v909 = vadd.f32 %v908, 0.5
    %v910 = vtanh.pop %v905
    %v911 = vmul.f32 %v905, 0.5
    %v912 = vtanh.pop %v911
    %v913 = vmul.f32 %v912, 0.5
    %v914 = vadd.f32 %v913, 0.5
    %v915 = vmul.f32 %v909, %v779
    %v916 = vmul.f32 %v909, %v910
    %918 = vrot.lane.b32.xlu0 %v916, 64
    %v919 = vpop.permute.xlu0 %918
    %v921 = vadd.f32 %v915, %v919
    %v922 = vtanh.pop %v921
    %v923 = vmul.f32 %v914, %v922
    %925 = vrot.lane.b32.xlu0 %v923, 64
    %v926 = vpop.permute.xlu0 %925
    %v928 = vsel %vm183, %v926, %v846
    %v929 = vpack.c.bf16 %v928, %v928
    %930 = vmatprep.subr.bf16.mxu0 %v327
    %931 = vmatpush1.bf16.msra.mxu0 %v326
    %932 = vmatprep.subr.bf16.mxu0 %v329
    %933 = vmatpush1.bf16.msra.mxu0 %v328
    %934 = vmatprep.subr.bf16.mxu0 %v331
    %935 = vmatpush1.bf16.msra.mxu0 %v330
    %936 = vmatprep.subr.bf16.mxu0 %v333
    %937 = vmatpush1.bf16.msra.mxu0 %v332
    %938 = vmatprep.subr.bf16.mxu0 %v335
    %939 = vmatpush1.bf16.msra.mxu0 %v334
    %940 = vmatprep.subr.bf16.mxu0 %v337
    %941 = vmatpush1.bf16.msra.mxu0 %v336
    %942 = vmatprep.subr.bf16.mxu0 %v339
    %943 = vmatpush1.bf16.msra.mxu0 %v338
    %944 = vmatprep.subr.bf16.mxu0 %v341
    %945 = vmatpush1.bf16.msra.mxu0 %v340
    %946 = vmatprep.subr.bf16.mxu0 0
    %947 = vmatpush1.bf16.msra.mxu0 0
    %948 = vmatprep.subr.bf16.mxu0 0
    %949 = vmatpush1.bf16.msra.mxu0 0
    %950 = vmatprep.subr.bf16.mxu0 0
    %951 = vmatpush1.bf16.msra.mxu0 0
    %952 = vmatprep.subr.bf16.mxu0 0
    %953 = vmatpush1.bf16.msra.mxu0 0
    %954 = vmatprep.subr.bf16.mxu0 0
    %955 = vmatpush1.bf16.msra.mxu0 0
    %956 = vmatprep.subr.bf16.mxu0 0
    %957 = vmatpush1.bf16.msra.mxu0 0
    %958 = vmatprep.subr.bf16.mxu0 0
    %959 = vmatpush1.bf16.msra.mxu0 0
    %960 = vmatprep.subr.bf16.mxu0 0
    %961 = vmatpush1.bf16.msra.mxu0 0
    %962 = vmatprep.mubr.bf16.mxu0 0
    %963 = vmatmul.mubr.bf16.gmra.mrb[0].mxu0 %v929
    %v964 = vpop.f32.mrb[0].mxu0
    %v965 = vadd.f32 %v110, %v964
    %v966 = vpop.f32.mrb[0].mxu0
    %v967 = vadd.f32 %v114, %v966
    %v968 = vpop.f32.mrb[0].mxu0
    %v969 = vpop.f32.mrb[0].mxu0
    %970 = vdwg.mxu0
    %v971 = vmul.f32 %v965, 0.5
    %v972 = vtanh.pop %v971
    %v973 = vmul.f32 %v972, 0.5
    %v974 = vadd.f32 %v973, 0.5
    %v975 = vtanh.pop %v967
    %v976 = vmul.f32 %v967, 0.5
    %v977 = vtanh.pop %v976
    %v978 = vmul.f32 %v977, 0.5
    %v979 = vadd.f32 %v978, 0.5
    %v980 = vmul.f32 %v974, %v844
    %v981 = vmul.f32 %v974, %v975
    %983 = vrot.lane.b32.xlu0 %v981, 64
    %v984 = vpop.permute.xlu0 %983
    %v986 = vadd.f32 %v980, %v984
    %v987 = vtanh.pop %v986
    %v988 = vmul.f32 %v979, %v987
    %vm989 = vcmp.eq.s32.totalorder %v80, 5
    %v990 = vsel %vm989, %v78, 0.0
    %v991 = vsel %vm126, %v990, 0.0
    %992 = vadd.xlane.f32.xlu0 %v991
    %v993 = vpop.xlane.xlu0 %992
    %v994 = vmul.f32 %v993, %v86
    %v995 = vmul.f32 %v993, %v90
    %v996 = vadd.f32 %v994, %v98
    %v997 = vadd.f32 %v995, %v102
    %v998 = vpack.c.bf16 %v923, %v923
    %1000 = vrot.lane.b32.xlu0 %v998, 64
    %v1001 = vpop.permute.xlu0 %1000
    %v1003 = vsel %vm183, %v1001, 0
    %1005 = vmatprep.subr.bf16.mxu0 %v168
    %1006 = vmatpush1.bf16.msra.mxu0 %v167
    %1007 = vmatprep.subr.bf16.mxu0 %v170
    %1008 = vmatpush1.bf16.msra.mxu0 %v169
    %1009 = vmatprep.subr.bf16.mxu0 %v172
    %1010 = vmatpush1.bf16.msra.mxu0 %v171
    %1011 = vmatprep.subr.bf16.mxu0 %v174
    %1012 = vmatpush1.bf16.msra.mxu0 %v173
    %1013 = vmatprep.subr.bf16.mxu0 0
    %1014 = vmatpush1.bf16.msra.mxu0 0
    %1015 = vmatprep.subr.bf16.mxu0 0
    %1016 = vmatpush1.bf16.msra.mxu0 0
    %1017 = vmatprep.subr.bf16.mxu0 0
    %1018 = vmatpush1.bf16.msra.mxu0 0
    %1019 = vmatprep.subr.bf16.mxu0 0
    %1020 = vmatpush1.bf16.msra.mxu0 0
    %1021 = vmatprep.subr.bf16.mxu0 0
    %1022 = vmatpush1.bf16.msra.mxu0 0
    %1023 = vmatprep.subr.bf16.mxu0 0
    %1024 = vmatpush1.bf16.msra.mxu0 0
    %1025 = vmatprep.subr.bf16.mxu0 0
    %1026 = vmatpush1.bf16.msra.mxu0 0
    %1027 = vmatprep.subr.bf16.mxu0 0
    %1028 = vmatpush1.bf16.msra.mxu0 0
    %1029 = vmatprep.subr.bf16.mxu0 0
    %1030 = vmatpush1.bf16.msra.mxu0 0
    %1031 = vmatprep.subr.bf16.mxu0 0
    %1032 = vmatpush1.bf16.msra.mxu0 0
    %1033 = vmatprep.subr.bf16.mxu0 0
    %1034 = vmatpush1.bf16.msra.mxu0 0
    %1035 = vmatprep.subr.bf16.mxu0 0
    %1036 = vmatpush1.bf16.msra.mxu0 0
    %1037 = vmatprep.mubr.bf16.mxu0 0
    %1038 = vmatmul.mubr.bf16.gmra.mrb[0].mxu0 %v1003
    %v1039 = vpop.f32.mrb[0].mxu0
    %v1040 = vadd.f32 0.0, %v1039
    %v1041 = vpop.f32.mrb[0].mxu0
    %v1042 = vadd.f32 0.0, %v1041
    %v1043 = vpop.f32.mrb[0].mxu0
    %v1044 = vpop.f32.mrb[0].mxu0
    %1045 = vdwg.mxu0
    %v1046 = vadd.f32 %v996, %v1040
    %v1047 = vadd.f32 %v997, %v1042
    %v1048 = vmul.f32 %v1046, 0.5
    %v1049 = vtanh.pop %v1048
    %v1050 = vmul.f32 %v1049, 0.5
    %v1051 = vadd.f32 %v1050, 0.5
    %v1052 = vtanh.pop %v1047
    %v1053 = vmul.f32 %v1047, 0.5
    %v1054 = vtanh.pop %v1053
    %v1055 = vmul.f32 %v1054, 0.5
    %v1056 = vadd.f32 %v1055, 0.5
    %v1057 = vmul.f32 %v1051, %v921
    %v1058 = vmul.f32 %v1051, %v1052
    %1060 = vrot.lane.b32.xlu0 %v1058, 64
    %v1061 = vpop.permute.xlu0 %1060
    %v1063 = vadd.f32 %v1057, %v1061
    %v1064 = vtanh.pop %v1063
    %v1065 = vmul.f32 %v1056, %v1064
    %1067 = vrot.lane.b32.xlu0 %v1065, 64
    %v1068 = vpop.permute.xlu0 %1067
    %v1070 = vsel %vm183, %v1068, %v988
    %v1071 = vpack.c.bf16 %v1070, %v1070
    %1072 = vmatprep.subr.bf16.mxu0 %v327
    %1073 = vmatpush1.bf16.msra.mxu0 %v326
    %1074 = vmatprep.subr.bf16.mxu0 %v329
    %1075 = vmatpush1.bf16.msra.mxu0 %v328
    %1076 = vmatprep.subr.bf16.mxu0 %v331
    %1077 = vmatpush1.bf16.msra.mxu0 %v330
    %1078 = vmatprep.subr.bf16.mxu0 %v333
    %1079 = vmatpush1.bf16.msra.mxu0 %v332
    %1080 = vmatprep.subr.bf16.mxu0 %v335
    %1081 = vmatpush1.bf16.msra.mxu0 %v334
    %1082 = vmatprep.subr.bf16.mxu0 %v337
    %1083 = vmatpush1.bf16.msra.mxu0 %v336
    %1084 = vmatprep.subr.bf16.mxu0 %v339
    %1085 = vmatpush1.bf16.msra.mxu0 %v338
    %1086 = vmatprep.subr.bf16.mxu0 %v341
    %1087 = vmatpush1.bf16.msra.mxu0 %v340
    %1088 = vmatprep.subr.bf16.mxu0 0
    %1089 = vmatpush1.bf16.msra.mxu0 0
    %1090 = vmatprep.subr.bf16.mxu0 0
    %1091 = vmatpush1.bf16.msra.mxu0 0
    %1092 = vmatprep.subr.bf16.mxu0 0
    %1093 = vmatpush1.bf16.msra.mxu0 0
    %1094 = vmatprep.subr.bf16.mxu0 0
    %1095 = vmatpush1.bf16.msra.mxu0 0
    %1096 = vmatprep.subr.bf16.mxu0 0
    %1097 = vmatpush1.bf16.msra.mxu0 0
    %1098 = vmatprep.subr.bf16.mxu0 0
    %1099 = vmatpush1.bf16.msra.mxu0 0
    %1100 = vmatprep.subr.bf16.mxu0 0
    %1101 = vmatpush1.bf16.msra.mxu0 0
    %1102 = vmatprep.subr.bf16.mxu0 0
    %1103 = vmatpush1.bf16.msra.mxu0 0
    %1104 = vmatprep.mubr.bf16.mxu0 0
    %1105 = vmatmul.mubr.bf16.gmra.mrb[0].mxu0 %v1071
    %v1106 = vpop.f32.mrb[0].mxu0
    %v1107 = vadd.f32 %v110, %v1106
    %v1108 = vpop.f32.mrb[0].mxu0
    %v1109 = vadd.f32 %v114, %v1108
    %v1110 = vpop.f32.mrb[0].mxu0
    %v1111 = vpop.f32.mrb[0].mxu0
    %1112 = vdwg.mxu0
    %v1113 = vmul.f32 %v1107, 0.5
    %v1114 = vtanh.pop %v1113
    %v1115 = vmul.f32 %v1114, 0.5
    %v1116 = vadd.f32 %v1115, 0.5
    %v1117 = vtanh.pop %v1109
    %v1118 = vmul.f32 %v1109, 0.5
    %v1119 = vtanh.pop %v1118
    %v1120 = vmul.f32 %v1119, 0.5
    %v1121 = vadd.f32 %v1120, 0.5
    %v1122 = vmul.f32 %v1116, %v986
    %v1123 = vmul.f32 %v1116, %v1117
    %1125 = vrot.lane.b32.xlu0 %v1123, 64
    %v1126 = vpop.permute.xlu0 %1125
    %v1128 = vadd.f32 %v1122, %v1126
    %v1129 = vtanh.pop %v1128
    %v1130 = vmul.f32 %v1121, %v1129
    %vm1131 = vcmp.eq.s32.totalorder %v80, 6
    %v1132 = vsel %vm1131, %v78, 0.0
    %v1133 = vsel %vm126, %v1132, 0.0
    %1134 = vadd.xlane.f32.xlu0 %v1133
    %v1135 = vpop.xlane.xlu0 %1134
    %v1136 = vmul.f32 %v1135, %v86
    %v1137 = vmul.f32 %v1135, %v90
    %v1138 = vadd.f32 %v1136, %v98
    %v1139 = vadd.f32 %v1137, %v102
    %v1140 = vpack.c.bf16 %v1065, %v1065
    %1142 = vrot.lane.b32.xlu0 %v1140, 64
    %v1143 = vpop.permute.xlu0 %1142
    %v1145 = vsel %vm183, %v1143, 0
    %1147 = vmatprep.subr.bf16.mxu0 %v168
    %1148 = vmatpush1.bf16.msra.mxu0 %v167
    %1149 = vmatprep.subr.bf16.mxu0 %v170
    %1150 = vmatpush1.bf16.msra.mxu0 %v169
    %1151 = vmatprep.subr.bf16.mxu0 %v172
    %1152 = vmatpush1.bf16.msra.mxu0 %v171
    %1153 = vmatprep.subr.bf16.mxu0 %v174
    %1154 = vmatpush1.bf16.msra.mxu0 %v173
    %1155 = vmatprep.subr.bf16.mxu0 0
    %1156 = vmatpush1.bf16.msra.mxu0 0
    %1157 = vmatprep.subr.bf16.mxu0 0
    %1158 = vmatpush1.bf16.msra.mxu0 0
    %1159 = vmatprep.subr.bf16.mxu0 0
    %1160 = vmatpush1.bf16.msra.mxu0 0
    %1161 = vmatprep.subr.bf16.mxu0 0
    %1162 = vmatpush1.bf16.msra.mxu0 0
    %1163 = vmatprep.subr.bf16.mxu0 0
    %1164 = vmatpush1.bf16.msra.mxu0 0
    %1165 = vmatprep.subr.bf16.mxu0 0
    %1166 = vmatpush1.bf16.msra.mxu0 0
    %1167 = vmatprep.subr.bf16.mxu0 0
    %1168 = vmatpush1.bf16.msra.mxu0 0
    %1169 = vmatprep.subr.bf16.mxu0 0
    %1170 = vmatpush1.bf16.msra.mxu0 0
    %1171 = vmatprep.subr.bf16.mxu0 0
    %1172 = vmatpush1.bf16.msra.mxu0 0
    %1173 = vmatprep.subr.bf16.mxu0 0
    %1174 = vmatpush1.bf16.msra.mxu0 0
    %1175 = vmatprep.subr.bf16.mxu0 0
    %1176 = vmatpush1.bf16.msra.mxu0 0
    %1177 = vmatprep.subr.bf16.mxu0 0
    %1178 = vmatpush1.bf16.msra.mxu0 0
    %1179 = vmatprep.mubr.bf16.mxu0 0
    %1180 = vmatmul.mubr.bf16.gmra.mrb[0].mxu0 %v1145
    %v1181 = vpop.f32.mrb[0].mxu0
    %v1182 = vadd.f32 0.0, %v1181
    %v1183 = vpop.f32.mrb[0].mxu0
    %v1184 = vadd.f32 0.0, %v1183
    %v1185 = vpop.f32.mrb[0].mxu0
    %v1186 = vpop.f32.mrb[0].mxu0
    %1187 = vdwg.mxu0
    %v1188 = vadd.f32 %v1138, %v1182
    %v1189 = vadd.f32 %v1139, %v1184
    %v1190 = vmul.f32 %v1188, 0.5
    %v1191 = vtanh.pop %v1190
    %v1192 = vmul.f32 %v1191, 0.5
    %v1193 = vadd.f32 %v1192, 0.5
    %v1194 = vtanh.pop %v1189
    %v1195 = vmul.f32 %v1189, 0.5
    %v1196 = vtanh.pop %v1195
    %v1197 = vmul.f32 %v1196, 0.5
    %v1198 = vadd.f32 %v1197, 0.5
    %v1199 = vmul.f32 %v1193, %v1063
    %v1200 = vmul.f32 %v1193, %v1194
    %1202 = vrot.lane.b32.xlu0 %v1200, 64
    %v1203 = vpop.permute.xlu0 %1202
    %v1205 = vadd.f32 %v1199, %v1203
    %v1206 = vtanh.pop %v1205
    %v1207 = vmul.f32 %v1198, %v1206
    %1209 = vrot.lane.b32.xlu0 %v1207, 64
    %v1210 = vpop.permute.xlu0 %1209
    %v1212 = vsel %vm183, %v1210, %v1130
    %v1213 = vpack.c.bf16 %v1212, %v1212
    %1214 = vmatprep.subr.bf16.mxu0 %v327
    %1215 = vmatpush1.bf16.msra.mxu0 %v326
    %1216 = vmatprep.subr.bf16.mxu0 %v329
    %1217 = vmatpush1.bf16.msra.mxu0 %v328
    %1218 = vmatprep.subr.bf16.mxu0 %v331
    %1219 = vmatpush1.bf16.msra.mxu0 %v330
    %1220 = vmatprep.subr.bf16.mxu0 %v333
    %1221 = vmatpush1.bf16.msra.mxu0 %v332
    %1222 = vmatprep.subr.bf16.mxu0 %v335
    %1223 = vmatpush1.bf16.msra.mxu0 %v334
    %1224 = vmatprep.subr.bf16.mxu0 %v337
    %1225 = vmatpush1.bf16.msra.mxu0 %v336
    %1226 = vmatprep.subr.bf16.mxu0 %v339
    %1227 = vmatpush1.bf16.msra.mxu0 %v338
    %1228 = vmatprep.subr.bf16.mxu0 %v341
    %1229 = vmatpush1.bf16.msra.mxu0 %v340
    %1230 = vmatprep.subr.bf16.mxu0 0
    %1231 = vmatpush1.bf16.msra.mxu0 0
    %1232 = vmatprep.subr.bf16.mxu0 0
    %1233 = vmatpush1.bf16.msra.mxu0 0
    %1234 = vmatprep.subr.bf16.mxu0 0
    %1235 = vmatpush1.bf16.msra.mxu0 0
    %1236 = vmatprep.subr.bf16.mxu0 0
    %1237 = vmatpush1.bf16.msra.mxu0 0
    %1238 = vmatprep.subr.bf16.mxu0 0
    %1239 = vmatpush1.bf16.msra.mxu0 0
    %1240 = vmatprep.subr.bf16.mxu0 0
    %1241 = vmatpush1.bf16.msra.mxu0 0
    %1242 = vmatprep.subr.bf16.mxu0 0
    %1243 = vmatpush1.bf16.msra.mxu0 0
    %1244 = vmatprep.subr.bf16.mxu0 0
    %1245 = vmatpush1.bf16.msra.mxu0 0
    %1246 = vmatprep.mubr.bf16.mxu0 0
    %1247 = vmatmul.mubr.bf16.gmra.mrb[0].mxu0 %v1213
    %v1248 = vpop.f32.mrb[0].mxu0
    %v1249 = vadd.f32 %v110, %v1248
    %v1250 = vpop.f32.mrb[0].mxu0
    %v1251 = vadd.f32 %v114, %v1250
    %v1252 = vpop.f32.mrb[0].mxu0
    %v1253 = vpop.f32.mrb[0].mxu0
    %1254 = vdwg.mxu0
    %v1255 = vmul.f32 %v1249, 0.5
    %v1256 = vtanh.pop %v1255
    %v1257 = vmul.f32 %v1256, 0.5
    %v1258 = vadd.f32 %v1257, 0.5
    %v1259 = vtanh.pop %v1251
    %v1260 = vmul.f32 %v1251, 0.5
    %v1261 = vtanh.pop %v1260
    %v1262 = vmul.f32 %v1261, 0.5
    %v1263 = vadd.f32 %v1262, 0.5
    %v1264 = vmul.f32 %v1258, %v1128
    %v1265 = vmul.f32 %v1258, %v1259
    %1267 = vrot.lane.b32.xlu0 %v1265, 64
    %v1268 = vpop.permute.xlu0 %1267
    %v1270 = vadd.f32 %v1264, %v1268
    %v1271 = vtanh.pop %v1270
    %v1272 = vmul.f32 %v1263, %v1271
    %vm1273 = vcmp.eq.s32.totalorder %v80, 7
    %v1274 = vsel %vm1273, %v78, 0.0
    %v1275 = vsel %vm126, %v1274, 0.0
    %1276 = vadd.xlane.f32.xlu0 %v1275
    %v1277 = vpop.xlane.xlu0 %1276
    %v1278 = vmul.f32 %v1277, %v86
    %v1279 = vmul.f32 %v1277, %v90
    %v1280 = vadd.f32 %v1278, %v98
    %v1281 = vadd.f32 %v1279, %v102
    %v1282 = vpack.c.bf16 %v1207, %v1207
    %1284 = vrot.lane.b32.xlu0 %v1282, 64
    %v1285 = vpop.permute.xlu0 %1284
    %v1287 = vsel %vm183, %v1285, 0
    %1289 = vmatprep.subr.bf16.mxu0 %v168
    %1290 = vmatpush1.bf16.msra.mxu0 %v167
    %1291 = vmatprep.subr.bf16.mxu0 %v170
    %1292 = vmatpush1.bf16.msra.mxu0 %v169
    %1293 = vmatprep.subr.bf16.mxu0 %v172
    %1294 = vmatpush1.bf16.msra.mxu0 %v171
    %1295 = vmatprep.subr.bf16.mxu0 %v174
    %1296 = vmatpush1.bf16.msra.mxu0 %v173
    %1297 = vmatprep.subr.bf16.mxu0 0
    %1298 = vmatpush1.bf16.msra.mxu0 0
    %1299 = vmatprep.subr.bf16.mxu0 0
    %1300 = vmatpush1.bf16.msra.mxu0 0
    %1301 = vmatprep.subr.bf16.mxu0 0
    %1302 = vmatpush1.bf16.msra.mxu0 0
    %1303 = vmatprep.subr.bf16.mxu0 0
    %1304 = vmatpush1.bf16.msra.mxu0 0
    %1305 = vmatprep.subr.bf16.mxu0 0
    %1306 = vmatpush1.bf16.msra.mxu0 0
    %1307 = vmatprep.subr.bf16.mxu0 0
    %1308 = vmatpush1.bf16.msra.mxu0 0
    %1309 = vmatprep.subr.bf16.mxu0 0
    %1310 = vmatpush1.bf16.msra.mxu0 0
    %1311 = vmatprep.subr.bf16.mxu0 0
    %1312 = vmatpush1.bf16.msra.mxu0 0
    %1313 = vmatprep.subr.bf16.mxu0 0
    %1314 = vmatpush1.bf16.msra.mxu0 0
    %1315 = vmatprep.subr.bf16.mxu0 0
    %1316 = vmatpush1.bf16.msra.mxu0 0
    %1317 = vmatprep.subr.bf16.mxu0 0
    %1318 = vmatpush1.bf16.msra.mxu0 0
    %1319 = vmatprep.subr.bf16.mxu0 0
    %1320 = vmatpush1.bf16.msra.mxu0 0
    %1321 = vmatprep.mubr.bf16.mxu0 0
    %1322 = vmatmul.mubr.bf16.gmra.mrb[0].mxu0 %v1287
    %v1323 = vpop.f32.mrb[0].mxu0
    %v1324 = vadd.f32 0.0, %v1323
    %v1325 = vpop.f32.mrb[0].mxu0
    %v1326 = vadd.f32 0.0, %v1325
    %v1327 = vpop.f32.mrb[0].mxu0
    %v1328 = vpop.f32.mrb[0].mxu0
    %1329 = vdwg.mxu0
    %v1330 = vadd.f32 %v1280, %v1324
    %v1331 = vadd.f32 %v1281, %v1326
    %v1332 = vmul.f32 %v1330, 0.5
    %v1333 = vtanh.pop %v1332
    %v1334 = vmul.f32 %v1333, 0.5
    %v1335 = vadd.f32 %v1334, 0.5
    %v1336 = vtanh.pop %v1331
    %v1337 = vmul.f32 %v1331, 0.5
    %v1338 = vtanh.pop %v1337
    %v1339 = vmul.f32 %v1338, 0.5
    %v1340 = vadd.f32 %v1339, 0.5
    %v1341 = vmul.f32 %v1335, %v1205
    %v1342 = vmul.f32 %v1335, %v1336
    %1344 = vrot.lane.b32.xlu0 %v1342, 64
    %v1345 = vpop.permute.xlu0 %1344
    %v1347 = vadd.f32 %v1341, %v1345
    %v1348 = vtanh.pop %v1347
    %v1349 = vmul.f32 %v1340, %v1348
    %1351 = vrot.lane.b32.xlu0 %v1349, 64
    %v1352 = vpop.permute.xlu0 %1351
    %v1354 = vsel %vm183, %v1352, %v1272
    %v1355 = vpack.c.bf16 %v1354, %v1354
    %1356 = vmatprep.subr.bf16.mxu0 %v327
    %1357 = vmatpush1.bf16.msra.mxu0 %v326
    %1358 = vmatprep.subr.bf16.mxu0 %v329
    %1359 = vmatpush1.bf16.msra.mxu0 %v328
    %1360 = vmatprep.subr.bf16.mxu0 %v331
    %1361 = vmatpush1.bf16.msra.mxu0 %v330
    %1362 = vmatprep.subr.bf16.mxu0 %v333
    %1363 = vmatpush1.bf16.msra.mxu0 %v332
    %1364 = vmatprep.subr.bf16.mxu0 %v335
    %1365 = vmatpush1.bf16.msra.mxu0 %v334
    %1366 = vmatprep.subr.bf16.mxu0 %v337
    %1367 = vmatpush1.bf16.msra.mxu0 %v336
    %1368 = vmatprep.subr.bf16.mxu0 %v339
    %1369 = vmatpush1.bf16.msra.mxu0 %v338
    %1370 = vmatprep.subr.bf16.mxu0 %v341
    %1371 = vmatpush1.bf16.msra.mxu0 %v340
    %1372 = vmatprep.subr.bf16.mxu0 0
    %1373 = vmatpush1.bf16.msra.mxu0 0
    %1374 = vmatprep.subr.bf16.mxu0 0
    %1375 = vmatpush1.bf16.msra.mxu0 0
    %1376 = vmatprep.subr.bf16.mxu0 0
    %1377 = vmatpush1.bf16.msra.mxu0 0
    %1378 = vmatprep.subr.bf16.mxu0 0
    %1379 = vmatpush1.bf16.msra.mxu0 0
    %1380 = vmatprep.subr.bf16.mxu0 0
    %1381 = vmatpush1.bf16.msra.mxu0 0
    %1382 = vmatprep.subr.bf16.mxu0 0
    %1383 = vmatpush1.bf16.msra.mxu0 0
    %1384 = vmatprep.subr.bf16.mxu0 0
    %1385 = vmatpush1.bf16.msra.mxu0 0
    %1386 = vmatprep.subr.bf16.mxu0 0
    %1387 = vmatpush1.bf16.msra.mxu0 0
    %1388 = vmatprep.mubr.bf16.mxu0 0
    %1389 = vmatmul.mubr.bf16.gmra.mrb[0].mxu0 %v1355
    %v1390 = vpop.f32.mrb[0].mxu0
    %v1391 = vadd.f32 %v110, %v1390
    %v1392 = vpop.f32.mrb[0].mxu0
    %v1393 = vadd.f32 %v114, %v1392
    %v1394 = vpop.f32.mrb[0].mxu0
    %v1395 = vpop.f32.mrb[0].mxu0
    %1396 = vdwg.mxu0
    %v1397 = vmul.f32 %v1391, 0.5
    %v1398 = vtanh.pop %v1397
    %v1399 = vmul.f32 %v1398, 0.5
    %v1400 = vadd.f32 %v1399, 0.5
    %v1401 = vtanh.pop %v1393
    %v1402 = vmul.f32 %v1393, 0.5
    %v1403 = vtanh.pop %v1402
    %v1404 = vmul.f32 %v1403, 0.5
    %v1405 = vadd.f32 %v1404, 0.5
    %v1406 = vmul.f32 %v1400, %v1270
    %v1407 = vmul.f32 %v1400, %v1401
    %1409 = vrot.lane.b32.xlu0 %v1407, 64
    %v1410 = vpop.permute.xlu0 %1409
    %v1412 = vadd.f32 %v1406, %v1410
    %v1413 = vtanh.pop %v1412
    %v1414 = vmul.f32 %v1405, %v1413
    %1415 = vst.msk [vmem:[#allocation2] sm:$0xff] %vm183, %v1352
    %1417 = vrot.lane.b32.xlu0 %v1347, 64
    %v1418 = vpop.permute.xlu0 %1417
    %1420 = vst.msk [vmem:[%s118] sm:$0xff] %vm183, %v1418
    %1422 = vrot.lane.b32.xlu0 %v1414, 64
    %v1423 = vpop.permute.xlu0 %1422
    %1425 = vst.msk [vmem:[%s120] sm:$0xff] %vm183, %v1423
    %1427 = vrot.lane.b32.xlu0 %v1412, 64
    %v1428 = vpop.permute.xlu0 %1427
    %1430 = vst.msk [vmem:[%s122] sm:$0xff] %vm183, %v1428
    // Predicated region
    $region50: #{tpu_custom_call.1} parent=1 // pred_check
      %p1431 = pneg %p69
    $region51: #{tpu_custom_call.1} parent=1 // pred_check_branch
      %1433 = sbr.rel (%p1431) target = $region53
    $region52: #{tpu_custom_call.1} parent=1 // pred_region
      %v1434 = vld [vmem:[%s6] sm:$0x1]
      %v1435 = vlaneseq
      %v1436 = vshrl.u32 %v1435, 7
      %v1437 = vsub.s32 0, %v1436
      %v1438 = vrot.slane %v1434, %v1437
      %1440 = vrot.lane.b32.xlu0 %v1438, 64
      %v1441 = vpop.permute.xlu0 %1440
      %v1443 = vmul.f32 %v1414, %v1441
      %1445 = vrot.lane.b32.xlu0 %v1443, 64
      %v1446 = vpop.permute.xlu0 %1445
      %v1448 = vsel %vm183, %v1446, 0.0
      %1449 = vadd.xlane.f32.xlu0 %v1448
      %v1450 = vpop.xlane.xlu0 %1449
      %v1451 = vld [vmem:[%s7] sm:$0x1]
      %v1453 = vlaneseq
      %v1454 = vshrl.u32 %v1453, 7
      %v1455 = vsub.s32 0, %v1454
      %v1456 = vrot.slane %v1451, %v1455
      %v1458 = vadd.f32 %v1450, %v1456
      %v1459 = vld [vmem:[%s6 + $0x1] sm:$0x1]
      %v1460 = vlaneseq
      %v1461 = vshrl.u32 %v1460, 7
      %v1462 = vsub.s32 0, %v1461
      %v1463 = vrot.slane %v1459, %v1462
      %1465 = vrot.lane.b32.xlu0 %v1463, 64
      %v1466 = vpop.permute.xlu0 %1465
      %v1468 = vmul.f32 %v1414, %v1466
      %1470 = vrot.lane.b32.xlu0 %v1468, 64
      %v1471 = vpop.permute.xlu0 %1470
      %v1473 = vsel %vm183, %v1471, 0.0
      %1474 = vadd.xlane.f32.xlu0 %v1473
      %v1475 = vpop.xlane.xlu0 %1474
      %v1476 = vadd.f32 %v1475, %v1456
      %v1477 = vmul.f32 %v1458, 1.442695
      %v1478 = vpow.pop %v1477
      %v1479 = vmul.f32 %v1476, 1.442695
      %v1480 = vpow.pop %v1479
      %vm1481 = vcmask 7168
      %v1482 = vsel %vm1481, %v1478, %v1480
      %vm1483 = vcmask 15360
      %1484 = vst.msk [vmem:[%s8] sm:$0xff] %vm1483, %v1482
    $region53: #{tpu_custom_call.1} parent=1 // pred_fallthru
      _
    // Predicated region
    $region54: #{tpu_custom_call.1} parent=1 // pred_check
      _
    $region55: #{tpu_custom_call.1} parent=1 // pred_check_branch
      %1486 = sbr.rel (0) target = $region57
    $region56: #{tpu_custom_call.1} parent=1 // pred_region
      _
    $region57: #{tpu_custom_call.1} parent=1 // pred_fallthru
      _
    // Predicated region
    $region58: #{tpu_custom_call.1} parent=1 // pred_check
      _
    $region59: #{tpu_custom_call.1} parent=1 // pred_check_branch
      %1488 = sbr.rel (0) target = $region61
    $region60: #{tpu_custom_call.1} parent=1 // pred_region
      _
    $region61: #{tpu_custom_call.1} parent=1 // pred_fallthru
      _
    %1489 = vsyncpa [#allocation4], 1
    %1490 = vsyncpa [#allocation6], 1

</llo_original>
